<compile_context>
chip_gen: v6e
topology: v6e:2x2x1
jax: 0.10.0
libtpu: 0.0.40
codegen_flags: <defaults>
</compile_context>

<pallas_src>
import math

import numpy as np

import jax
import jax.numpy as jnp
from jax.experimental import pallas as pl
from jax.experimental.pallas import tpu as pltpu

# torch.nn.RMSNorm(eps=None) uses torch.finfo(input.dtype).eps; module inputs are f32 here.
EPS = float(np.finfo(np.float32).eps)


def _cdiv(a, b):
    return -(-a // b)


def _round_up(a, b):
    return _cdiv(a, b) * b


# ----------------------------------------------------------------------------
# Pallas kernel: one pooling level for a tile of Bt batch samples.
#   (N = Bt*P lanes, lane = sample_local*P + block; P = (H/2)*(W/2) of this level)
#   x_ref : (4, C_in,  N)  quad-major input, compute dtype
#   w_ref : (C_out, C_in)  1x1 conv weight, compute dtype
#   b_ref : (C_out, 1)     conv bias, f32
#   g_ref : (4, C_out, N)  RMSNorm weight in quad layout (0.5 Haar factor folded in)
#   o_ref : (4, C_out, N)  output; leading axis = subband [LL, LH, HL, HH]
# ----------------------------------------------------------------------------
def _make_level_kernel(Bt, P, n_per_sample):
    N = Bt * P
    inv_n = 1.0 / float(n_per_sample)

    def kernel(x_ref, w_ref, b_ref, g_ref, o_ref):
        f32 = jnp.float32
        w = w_ref[...]                                    # (C_out, C_in)
        bias = b_ref[...]                                 # (C_out, 1) f32

        # 1x1 conv: dense (C_out, C_in) @ (C_in, N) matmul on the MXU, one per quad slab.
        y = [jnp.dot(w, x_ref[q], preferred_element_type=f32) + bias for q in range(4)]

        # Per-sample RMSNorm statistics over (C_out, H, W):
        # fold quads + channels first, then segment-sum per sample via a tiny matmul with
        # an in-kernel iota-generated indicator (contiguous segments of length P).
        colsq = (jnp.sum(y[0] * y[0], axis=0, keepdims=True)
                 + jnp.sum(y[1] * y[1], axis=0, keepdims=True)
                 + jnp.sum(y[2] * y[2], axis=0, keepdims=True)
                 + jnp.sum(y[3] * y[3], axis=0, keepdims=True))          # (1, N) f32
        lane = jax.lax.broadcasted_iota(jnp.int32, (Bt, N), 1)
        row = jax.lax.broadcasted_iota(jnp.int32, (Bt, N), 0)
        lo = row * P
        seg = jnp.logical_and(lane >= lo, lane < lo + P).astype(f32)     # (Bt, N)
        ssum = jax.lax.dot_general(colsq, seg, (((1,), (1,)), ((), ())),
                                   preferred_element_type=f32)           # (1, Bt)
        inv = jax.lax.rsqrt(ssum * inv_n + EPS)                          # (1, Bt)
        scale = jnp.dot(inv, seg, preferred_element_type=f32)            # (1, N)

        # Normalize (RMSNorm weight already carries the 0.5 Haar normalization).
        a = y[0] * scale * g_ref[0].astype(f32)
        b2 = y[1] * scale * g_ref[1].astype(f32)
        c = y[2] * scale * g_ref[2].astype(f32)
        d = y[3] * scale * g_ref[3].astype(f32)

        # One-level 2D Haar wavelet packet = 8-add butterfly on the VPU.
        s0 = a + b2
        s1 = a - b2
        s2 = c + d
        s3 = c - d
        od = o_ref.dtype
        o_ref[0] = (s0 + s2).astype(od)   # LL
        o_ref[1] = (s1 + s3).astype(od)   # LH
        o_ref[2] = (s0 - s2).astype(od)   # HL
        o_ref[3] = (s1 - s3).astype(od)   # HH

    return kernel


# ----------------------------------------------------------------------------
# Tiling policy / VMEM budget (per-generation)
# ----------------------------------------------------------------------------
def _vmem_budget():
    """Returns (working-set budget for tile sizing, vmem_limit_bytes), scaled to the chip."""
    cap = 64 << 20  # conservative fallback (v7x per-TensorCore VMEM)
    try:
        cap = int(getattr(pltpu.get_tpu_info(), "vmem_capacity_bytes", cap))
    except Exception:
        pass
    cap = max(cap, 32 << 20)
    ws_budget = max(int(0.70 * cap), 24 << 20)
    vmem_limit = min(int(0.85 * cap), 127 << 20)
    return ws_budget, vmem_limit


def _pick_batch_tile(B, P, C_in, C_out, cd_bytes, out_bytes, ws_budget, min_steps=4):
    """Largest batch tile Bt (with Bt*P a multiple of 128 -> lane-dense blocks/stores)
    whose pipelined working set fits the VMEM budget, while keeping ~min_steps grid steps
    (and an even step count where possible, so both v7x TensorCores get work)."""
    m = 128 // math.gcd(P, 128)           # Bt granularity for lane-dense blocks

    def ws(bt):
        lanes = bt * P
        x_blk = 4 * C_in * lanes * cd_bytes          # input block (double-buffered)
        o_blk = 4 * C_out * lanes * out_bytes        # output block (double-buffered)
        g_res = 4 * C_out * lanes * cd_bytes         # resident RMSNorm weight (1 buffer)
        temps = (10 * C_out * lanes + 4 * bt * lanes + 16 * lanes) * 4   # f32/i32 temps
        return 2 * x_blk + 2 * o_blk + g_res + temps + (2 << 20)

    bt_cap = max(m, _round_up(B, m))
    bt = m
    while bt + m <= bt_cap and ws(bt + m) <= ws_budget:
        bt += m
    # Keep ~min_steps grid steps when the batch allows it (pipeline overlap / megacore).
    bt_steps = max(m, ((B // min_steps) // m) * m)
    bt = max(m, min(bt, bt_steps))
    n_steps = _cdiv(B, bt)
    if n_steps > 1 and n_steps % 2 == 1:
        bt_even = max(m, _round_up(_cdiv(B, n_steps + 1), m))
        if _cdiv(B, bt_even) % 2 == 0:
            bt = bt_even
            n_steps = _cdiv(B, bt)
    return bt, n_steps


# ----------------------------------------------------------------------------
# Wrapper-side layout plumbing (one XLA transpose per level boundary)
# ----------------------------------------------------------------------------
def _space_to_depth_input(x, Bp, Hh, Wh):
    """(B, C, H, W) -> (4, C, Bp*Hh*Wh); axis0 = quad (2*dh+dw), lanes = (sample, block)."""
    B, C = x.shape[0], x.shape[1]
    if Bp != B:
        x = jnp.pad(x, ((0, Bp - B), (0, 0), (0, 0), (0, 0)))
    x = x.reshape(Bp, C, Hh, 2, Wh, 2).transpose(3, 5, 1, 0, 2, 4)
    return x.reshape(4, C, Bp * Hh * Wh)


def _relayout_between_levels(o, Bp_prev, Bp_new, Hh, Wh):
    """Previous level's (4, C, Bp_prev*(2Hh)*(2Wh)) output -> next level's quad input
    (4, 4*C, Bp_new*Hh*Wh).  Single XLA transpose; pads/slices the batch axis as needed."""
    C = o.shape[1]
    o = o.reshape(4, C, Bp_prev, Hh, 2, Wh, 2)       # (s, c, b, i', dh, j', dw)
    if Bp_new > Bp_prev:
        o = jnp.pad(o, ((0, 0), (0, 0), (0, Bp_new - Bp_prev),
                        (0, 0), (0, 0), (0, 0), (0, 0)))
    elif Bp_new < Bp_prev:
        o = o[:, :, :Bp_new]
    o = o.transpose(4, 6, 0, 1, 2, 3, 5)             # (dh, dw, s, c, b, i', j')
    return o.reshape(4, 4 * C, Bp_new * Hh * Wh)


def _layout_rms_weight(g, Bt, Hh, Wh):
    """(C_out, H, W) RMSNorm weight -> (4, C_out, Bt*Hh*Wh) quad layout, tiled over the
    batch tile, with the 0.5 Haar normalization folded in."""
    C_out = g.shape[0]
    P = Hh * Wh
    gq = g.reshape(C_out, Hh, 2, Wh, 2).transpose(2, 4, 0, 1, 3).reshape(4, C_out, 1, P)
    gq = jnp.broadcast_to(gq, (4, C_out, Bt, P)).reshape(4, C_out, Bt * P)
    return 0.5 * gq


def _output_to_nchw(o, B, Hh, Wh):
    """(4, C_out, Bp*Hh*Wh) -> (B, 4*C_out, Hh, Wh) with channel = subband*C_out + c."""
    C = o.shape[1]
    o = o.reshape(4, C, -1, Hh, Wh)[:, :, :B]
    return o.transpose(2, 0, 1, 3, 4).reshape(B, 4 * C, Hh, Wh)


# ----------------------------------------------------------------------------
# Level driver
# ----------------------------------------------------------------------------
def _level_call(kernel, arrays, C_in, C_out, Bp, Bt, P, out_dtype, vmem_limit,
                const_pipeline_mode):
    N = Bt * P
    kw = {} if const_pipeline_mode is None else {"pipeline_mode": const_pipeline_mode}
    fn = pl.pallas_call(
        kernel,
        out_shape=jax.ShapeDtypeStruct((4, C_out, Bp * P), out_dtype),
        grid=(Bp // Bt,),
        in_specs=[
            pl.BlockSpec((4, C_in, N), lambda i: (0, 0, i)),              # batch-tiled input
            pl.BlockSpec((C_out, C_in), lambda i: (0, 0), **kw),          # conv weight
            pl.BlockSpec((C_out, 1), lambda i: (0, 0), **kw),             # conv bias
            pl.BlockSpec((4, C_out, N), lambda i: (0, 0, 0), **kw),       # RMSNorm weight
        ],
        out_specs=pl.BlockSpec((4, C_out, N), lambda i: (0, 0, i)),
        compiler_params=pltpu.CompilerParams(
            dimension_semantics=("parallel",),
            vmem_limit_bytes=int(vmem_limit),
        ),
    )
    return fn(*arrays)


def wavelet_pool_level_lowered(x_k, w, b, g_k, *, Bp, Bt, P, compute_dtype, out_dtype,
                               vmem_limit):
    """One pooling level on data already in quad layout.  x_k: (4, C_in, Bp*P)."""
    C_in = x_k.shape[1]
    C_out = w.shape[0]
    n_per_sample = 4 * C_out * P                     # = C_out * H * W at this level
    kernel = _make_level_kernel(Bt, P, n_per_sample)
    arrays = (x_k.astype(compute_dtype),
              w.astype(compute_dtype),
              b.reshape(C_out, 1).astype(jnp.float32),
              g_k.astype(compute_dtype))
    try:
        # Constant-index operands only need a single VMEM buffer.
        out = _level_call(kernel, arrays, C_in, C_out, Bp, Bt, P, out_dtype,
                          vmem_limit, pl.Buffered(1))
        return jax.block_until_ready(out)
    except Exception:
        # Fallback: default buffering (slightly more VMEM, same semantics).
        return _level_call(kernel, arrays, C_in, C_out, Bp, Bt, P, out_dtype,
                           vmem_limit, None)


def wavelet_pooling_2d_forward(x, params, compute_dtype=jnp.bfloat16,
                               final_dtype=jnp.float32):
    """Full module forward: num_levels x (conv1x1 -> RMSNorm((C,H,W)) -> Haar WPT level).
    Intermediate activations stay in compute_dtype and in the kernel's quad layout; only
    the final level emits final_dtype."""
    B = x.shape[0]
    H, W = x.shape[2], x.shape[3]
    ws_budget, vmem_limit = _vmem_budget()
    cd_bytes = jnp.dtype(compute_dtype).itemsize

    cur = None
    cur_Bp = 0
    num_levels = len(params)
    for li, (w, b, g) in enumerate(params):
        C_in, C_out = w.shape[1], w.shape[0]
        Hh, Wh = H // 2, W // 2
        P = Hh * Wh
        lvl_dtype = final_dtype if li == num_levels - 1 else compute_dtype
        Bt, n_steps = _pick_batch_tile(B, P, C_in, C_out, cd_bytes,
                                       jnp.dtype(lvl_dtype).itemsize, ws_budget)
        Bp = Bt * n_steps

        if li == 0:
            x_k = _space_to_depth_input(x.astype(compute_dtype), Bp, Hh, Wh)
        else:
            x_k = _relayout_between_levels(cur, cur_Bp, Bp, Hh, Wh)
        g_k = _layout_rms_weight(g, Bt, Hh, Wh)

        cur = wavelet_pool_level_lowered(x_k, w, b, g_k, Bp=Bp, Bt=Bt, P=P,
                                         compute_dtype=compute_dtype,
                                         out_dtype=lvl_dtype, vmem_limit=vmem_limit)
        cur_Bp = Bp
        H, W = Hh, Wh

    return _output_to_nchw(cur, B, H, W)


# ----------------------------------------------------------------------------
# Parameters + pure-JAX reference (for the correctness self-check)
# ----------------------------------------------------------------------------
def init_params(key, embed_dim, spatial_dim, num_levels):
    """Deterministic synthetic parameters; shapes follow the PyTorch __init__."""
    assert embed_dim % 4 == 0 and spatial_dim % (2 ** num_levels) == 0
    params = []
    cur = spatial_dim
    c_out = embed_dim // 4
    for _ in range(num_levels):
        key, kw, kb, kg = jax.random.split(key, 4)
        w = 0.1 * jax.random.normal(kw, (c_out, embed_dim), dtype=jnp.float32)   # 1x1 conv
        b = 0.1 * jax.random.normal(kb, (c_out,), dtype=jnp.float32)
        g = 1.0 + 0.05 * jax.random.normal(kg, (c_out, cur, cur), dtype=jnp.float32)
        params.append((w, b, g))
        cur = cur // 2
    return params


def _ref_forward(x, params):
    for (w, b, g) in params:
        y = jnp.einsum('oc,bchw->bohw', w, x) + b[None, :, None, None]
        ms = jnp.mean(y * y, axis=(1, 2, 3), keepdims=True)
        y = y * jax.lax.rsqrt(ms + EPS) * g[None]
        a = y[:, :, 0::2, 0::2]
        bb = y[:, :, 0::2, 1::2]
        c = y[:, :, 1::2, 0::2]
        d = y[:, :, 1::2, 1::2]
        ll = 0.5 * (a + bb + c + d)
        lh = 0.5 * (a - bb + c - d)
        hl = 0.5 * (a + bb - c - d)
        hh = 0.5 * (a - bb - c + d)
        x = jnp.concatenate([ll, lh, hl, hh], axis=1)
    return x


if __name__ == "__main__":
    # Small shapes consistent with the module: embed_dim % 4 == 0, spatial % 2^levels == 0.
    B, embed_dim, spatial_dim, num_levels = 4, 16, 16, 2

    key = jax.random.PRNGKey(0)
    key, kx = jax.random.split(key)
    x = jax.random.normal(kx, (B, embed_dim, spatial_dim, spatial_dim), dtype=jnp.float32)
    params = init_params(key, embed_dim, spatial_dim, num_levels)

    expected_shape = (B, embed_dim,
                      spatial_dim // (2 ** num_levels), spatial_dim // (2 ** num_levels))
    ref = jax.block_until_ready(_ref_forward(x, params))

    # f32 compute path: tight check against the f32 reference.
    out_f32 = jax.block_until_ready(
        wavelet_pooling_2d_forward(x, params, compute_dtype=jnp.float32))
    assert out_f32.shape == expected_shape, (out_f32.shape, expected_shape)
    np.testing.assert_allclose(np.asarray(out_f32), np.asarray(ref), rtol=2e-3, atol=2e-4)

    # bf16 fast path (bf16 matmul inputs + bf16 intermediate levels, f32 accumulation).
    out_bf16 = jax.block_until_ready(
        wavelet_pooling_2d_forward(x, params, compute_dtype=jnp.bfloat16))
    assert out_bf16.shape == expected_shape, (out_bf16.shape, expected_shape)
    np.testing.assert_allclose(np.asarray(out_bf16), np.asarray(ref), rtol=1e-1, atol=1e-1)

    print("KERNEL_OK")
</pallas_src>

<mosaic_0001>
module attributes {stable_mosaic.version = 11 : i64} {
  func.func @kernel(%arg0: i32, %arg1: memref<4x16x128xf32, #tpu.memory_space<vmem>>, %arg2: memref<4x16xf32, #tpu.memory_space<vmem>>, %arg3: memref<4x1xf32, #tpu.memory_space<vmem>>, %arg4: memref<4x4x128xf32, #tpu.memory_space<vmem>>, %arg5: memref<4x4x128xf32, #tpu.memory_space<vmem>>) attributes {dimension_semantics = [#tpu.dimension_semantics<parallel>], iteration_bounds = array<i64: 2>, scalar_prefetch = 0 : i64, scratch_operands = 0 : i64, tpu.core_type = #tpu.core_type<tc>, window_params = [{transform_indices = @transform_0, window_bounds = array<i64: 4, 16, 128>}, {pipeline_mode = #tpu.pipeline_mode<synchronous>, transform_indices = @transform_1, window_bounds = array<i64: 4, 16>}, {pipeline_mode = #tpu.pipeline_mode<synchronous>, transform_indices = @transform_2, window_bounds = array<i64: 4, 1>}, {pipeline_mode = #tpu.pipeline_mode<synchronous>, transform_indices = @transform_3, window_bounds = array<i64: 4, 4, 128>}, {transform_indices = @transform_4, window_bounds = array<i64: 4, 4, 128>}]} {
    %c0 = arith.constant 0 : index
    %c0_0 = arith.constant 0 : index
    %0 = vector.load %arg2[%c0, %c0_0] : memref<4x16xf32, #tpu.memory_space<vmem>>, vector<4x16xf32>
    %c0_1 = arith.constant 0 : index
    %c0_2 = arith.constant 0 : index
    %1 = vector.load %arg3[%c0_1, %c0_2] : memref<4x1xf32, #tpu.memory_space<vmem>>, vector<4x1xf32>
    %c0_3 = arith.constant 0 : index
    %c0_4 = arith.constant 0 : index
    %c0_5 = arith.constant 0 : index
    %2 = vector.load %arg1[%c0_3, %c0_4, %c0_5] : memref<4x16x128xf32, #tpu.memory_space<vmem>>, vector<1x16x128xf32>
    %3 = vector.shape_cast %2 : vector<1x16x128xf32> to vector<16x128xf32>
    %cst = arith.constant dense<0.000000e+00> : vector<4x128xf32>
    %4 = tpu.matmul %0, %3, %cst {dimension_numbers = #tpu.dot_dimension_numbers<[1], [0], [0], [1], [0, 0, 1, 1], [], []>} : vector<4x16xf32>, vector<16x128xf32>, vector<4x128xf32> -> vector<4x128xf32>
    %5 = vector.broadcast %1 : vector<4x1xf32> to vector<4x128xf32>
    %6 = arith.addf %4, %5 : vector<4x128xf32>
    %c1 = arith.constant 1 : index
    %c0_6 = arith.constant 0 : index
    %c0_7 = arith.constant 0 : index
    %7 = vector.load %arg1[%c1, %c0_6, %c0_7] : memref<4x16x128xf32, #tpu.memory_space<vmem>>, vector<1x16x128xf32>
    %8 = vector.shape_cast %7 : vector<1x16x128xf32> to vector<16x128xf32>
    %cst_8 = arith.constant dense<0.000000e+00> : vector<4x128xf32>
    %9 = tpu.matmul %0, %8, %cst_8 {dimension_numbers = #tpu.dot_dimension_numbers<[1], [0], [0], [1], [0, 0, 1, 1], [], []>} : vector<4x16xf32>, vector<16x128xf32>, vector<4x128xf32> -> vector<4x128xf32>
    %10 = vector.broadcast %1 : vector<4x1xf32> to vector<4x128xf32>
    %11 = arith.addf %9, %10 : vector<4x128xf32>
    %c2 = arith.constant 2 : index
    %c0_9 = arith.constant 0 : index
    %c0_10 = arith.constant 0 : index
    %12 = vector.load %arg1[%c2, %c0_9, %c0_10] : memref<4x16x128xf32, #tpu.memory_space<vmem>>, vector<1x16x128xf32>
    %13 = vector.shape_cast %12 : vector<1x16x128xf32> to vector<16x128xf32>
    %cst_11 = arith.constant dense<0.000000e+00> : vector<4x128xf32>
    %14 = tpu.matmul %0, %13, %cst_11 {dimension_numbers = #tpu.dot_dimension_numbers<[1], [0], [0], [1], [0, 0, 1, 1], [], []>} : vector<4x16xf32>, vector<16x128xf32>, vector<4x128xf32> -> vector<4x128xf32>
    %15 = vector.broadcast %1 : vector<4x1xf32> to vector<4x128xf32>
    %16 = arith.addf %14, %15 : vector<4x128xf32>
    %c3 = arith.constant 3 : index
    %c0_12 = arith.constant 0 : index
    %c0_13 = arith.constant 0 : index
    %17 = vector.load %arg1[%c3, %c0_12, %c0_13] : memref<4x16x128xf32, #tpu.memory_space<vmem>>, vector<1x16x128xf32>
    %18 = vector.shape_cast %17 : vector<1x16x128xf32> to vector<16x128xf32>
    %cst_14 = arith.constant dense<0.000000e+00> : vector<4x128xf32>
    %19 = tpu.matmul %0, %18, %cst_14 {dimension_numbers = #tpu.dot_dimension_numbers<[1], [0], [0], [1], [0, 0, 1, 1], [], []>} : vector<4x16xf32>, vector<16x128xf32>, vector<4x128xf32> -> vector<4x128xf32>
    %20 = vector.broadcast %1 : vector<4x1xf32> to vector<4x128xf32>
    %21 = arith.addf %19, %20 : vector<4x128xf32>
    %22 = arith.mulf %6, %6 : vector<4x128xf32>
    %cst_15 = arith.constant dense<0.000000e+00> : vector<128xf32>
    %23 = vector.multi_reduction <add>, %22, %cst_15 [0] : vector<4x128xf32> to vector<128xf32>
    %24 = vector.shape_cast %23 : vector<128xf32> to vector<1x128xf32>
    %25 = arith.mulf %11, %11 : vector<4x128xf32>
    %cst_16 = arith.constant dense<0.000000e+00> : vector<128xf32>
    %26 = vector.multi_reduction <add>, %25, %cst_16 [0] : vector<4x128xf32> to vector<128xf32>
    %27 = vector.shape_cast %26 : vector<128xf32> to vector<1x128xf32>
    %28 = arith.addf %24, %27 : vector<1x128xf32>
    %29 = arith.mulf %16, %16 : vector<4x128xf32>
    %cst_17 = arith.constant dense<0.000000e+00> : vector<128xf32>
    %30 = vector.multi_reduction <add>, %29, %cst_17 [0] : vector<4x128xf32> to vector<128xf32>
    %31 = vector.shape_cast %30 : vector<128xf32> to vector<1x128xf32>
    %32 = arith.addf %28, %31 : vector<1x128xf32>
    %33 = arith.mulf %21, %21 : vector<4x128xf32>
    %cst_18 = arith.constant dense<0.000000e+00> : vector<128xf32>
    %34 = vector.multi_reduction <add>, %33, %cst_18 [0] : vector<4x128xf32> to vector<128xf32>
    %35 = vector.shape_cast %34 : vector<128xf32> to vector<1x128xf32>
    %36 = arith.addf %32, %35 : vector<1x128xf32>
    %37 = tpu.iota {dimensions = array<i32: 1>} : vector<2x128xi32>
    %38 = tpu.iota {dimensions = array<i32: 0>} : vector<2x128xi32>
    %c64_i32 = arith.constant 64 : i32
    %39 = vector.broadcast %c64_i32 : i32 to vector<2x128xi32>
    %40 = arith.muli %38, %39 : vector<2x128xi32>
    %41 = arith.cmpi sge, %37, %40 : vector<2x128xi32>
    %c64_i32_19 = arith.constant 64 : i32
    %42 = vector.broadcast %c64_i32_19 : i32 to vector<2x128xi32>
    %43 = arith.addi %40, %42 : vector<2x128xi32>
    %44 = arith.cmpi slt, %37, %43 : vector<2x128xi32>
    %45 = arith.andi %41, %44 : vector<2x128xi1>
    %46 = arith.extui %45 : vector<2x128xi1> to vector<2x128xi32>
    %47 = arith.sitofp %46 : vector<2x128xi32> to vector<2x128xf32>
    %cst_20 = arith.constant dense<0.000000e+00> : vector<1x2xf32>
    %48 = tpu.matmul %36, %47, %cst_20 {dimension_numbers = #tpu.dot_dimension_numbers<[1], [1], [0], [0], [0, 0, 1, 0], [], []>} : vector<1x128xf32>, vector<2x128xf32>, vector<1x2xf32> -> vector<1x2xf32>
    %cst_21 = arith.constant 9.765625E-4 : f32
    %49 = vector.broadcast %cst_21 : f32 to vector<1x2xf32>
    %50 = arith.mulf %48, %49 : vector<1x2xf32>
    %cst_22 = arith.constant 1.1920929E-7 : f32
    %51 = vector.broadcast %cst_22 : f32 to vector<1x2xf32>
    %52 = arith.addf %50, %51 : vector<1x2xf32>
    %53 = math.rsqrt %52 : vector<1x2xf32>
    %cst_23 = arith.constant dense<0.000000e+00> : vector<1x128xf32>
    %54 = tpu.matmul %53, %47, %cst_23 {dimension_numbers = #tpu.dot_dimension_numbers<[1], [0], [0], [1], [0, 0, 1, 1], [], []>} : vector<1x2xf32>, vector<2x128xf32>, vector<1x128xf32> -> vector<1x128xf32>
    %55 = vector.broadcast %54 : vector<1x128xf32> to vector<4x128xf32>
    %56 = arith.mulf %6, %55 : vector<4x128xf32>
    %c0_24 = arith.constant 0 : index
    %c0_25 = arith.constant 0 : index
    %c0_26 = arith.constant 0 : index
    %57 = vector.load %arg4[%c0_24, %c0_25, %c0_26] : memref<4x4x128xf32, #tpu.memory_space<vmem>>, vector<1x4x128xf32>
    %58 = vector.shape_cast %57 : vector<1x4x128xf32> to vector<4x128xf32>
    %59 = arith.mulf %56, %58 : vector<4x128xf32>
    %60 = vector.broadcast %54 : vector<1x128xf32> to vector<4x128xf32>
    %61 = arith.mulf %11, %60 : vector<4x128xf32>
    %c1_27 = arith.constant 1 : index
    %c0_28 = arith.constant 0 : index
    %c0_29 = arith.constant 0 : index
    %62 = vector.load %arg4[%c1_27, %c0_28, %c0_29] : memref<4x4x128xf32, #tpu.memory_space<vmem>>, vector<1x4x128xf32>
    %63 = vector.shape_cast %62 : vector<1x4x128xf32> to vector<4x128xf32>
    %64 = arith.mulf %61, %63 : vector<4x128xf32>
    %65 = vector.broadcast %54 : vector<1x128xf32> to vector<4x128xf32>
    %66 = arith.mulf %16, %65 : vector<4x128xf32>
    %c2_30 = arith.constant 2 : index
    %c0_31 = arith.constant 0 : index
    %c0_32 = arith.constant 0 : index
    %67 = vector.load %arg4[%c2_30, %c0_31, %c0_32] : memref<4x4x128xf32, #tpu.memory_space<vmem>>, vector<1x4x128xf32>
    %68 = vector.shape_cast %67 : vector<1x4x128xf32> to vector<4x128xf32>
    %69 = arith.mulf %66, %68 : vector<4x128xf32>
    %70 = vector.broadcast %54 : vector<1x128xf32> to vector<4x128xf32>
    %71 = arith.mulf %21, %70 : vector<4x128xf32>
    %c3_33 = arith.constant 3 : index
    %c0_34 = arith.constant 0 : index
    %c0_35 = arith.constant 0 : index
    %72 = vector.load %arg4[%c3_33, %c0_34, %c0_35] : memref<4x4x128xf32, #tpu.memory_space<vmem>>, vector<1x4x128xf32>
    %73 = vector.shape_cast %72 : vector<1x4x128xf32> to vector<4x128xf32>
    %74 = arith.mulf %71, %73 : vector<4x128xf32>
    %75 = arith.addf %59, %64 : vector<4x128xf32>
    %76 = arith.subf %59, %64 : vector<4x128xf32>
    %77 = arith.addf %69, %74 : vector<4x128xf32>
    %78 = arith.subf %69, %74 : vector<4x128xf32>
    %79 = arith.addf %75, %77 : vector<4x128xf32>
    %c0_36 = arith.constant 0 : index
    %c0_37 = arith.constant 0 : index
    %c0_38 = arith.constant 0 : index
    %80 = vector.load %arg5[%c0_36, %c0_37, %c0_38] : memref<4x4x128xf32, #tpu.memory_space<vmem>>, vector<1x4x128xf32>
    %81 = vector.shape_cast %80 : vector<1x4x128xf32> to vector<4x128xf32>
    %82 = vector.shape_cast %79 : vector<4x128xf32> to vector<1x4x128xf32>
    tpu.vector_store %arg5[%c0_36, %c0_37, %c0_38], %82 {strides = array<i32>} : memref<4x4x128xf32, #tpu.memory_space<vmem>>, vector<1x4x128xf32>,
    %83 = arith.addf %76, %78 : vector<4x128xf32>
    %c1_39 = arith.constant 1 : index
    %c0_40 = arith.constant 0 : index
    %c0_41 = arith.constant 0 : index
    %84 = vector.load %arg5[%c1_39, %c0_40, %c0_41] : memref<4x4x128xf32, #tpu.memory_space<vmem>>, vector<1x4x128xf32>
    %85 = vector.shape_cast %84 : vector<1x4x128xf32> to vector<4x128xf32>
    %86 = vector.shape_cast %83 : vector<4x128xf32> to vector<1x4x128xf32>
    tpu.vector_store %arg5[%c1_39, %c0_40, %c0_41], %86 {strides = array<i32>} : memref<4x4x128xf32, #tpu.memory_space<vmem>>, vector<1x4x128xf32>,
    %87 = arith.subf %75, %77 : vector<4x128xf32>
    %c2_42 = arith.constant 2 : index
    %c0_43 = arith.constant 0 : index
    %c0_44 = arith.constant 0 : index
    %88 = vector.load %arg5[%c2_42, %c0_43, %c0_44] : memref<4x4x128xf32, #tpu.memory_space<vmem>>, vector<1x4x128xf32>
    %89 = vector.shape_cast %88 : vector<1x4x128xf32> to vector<4x128xf32>
    %90 = vector.shape_cast %87 : vector<4x128xf32> to vector<1x4x128xf32>
    tpu.vector_store %arg5[%c2_42, %c0_43, %c0_44], %90 {strides = array<i32>} : memref<4x4x128xf32, #tpu.memory_space<vmem>>, vector<1x4x128xf32>,
    %91 = arith.subf %76, %78 : vector<4x128xf32>
    %c3_45 = arith.constant 3 : index
    %c0_46 = arith.constant 0 : index
    %c0_47 = arith.constant 0 : index
    %92 = vector.load %arg5[%c3_45, %c0_46, %c0_47] : memref<4x4x128xf32, #tpu.memory_space<vmem>>, vector<1x4x128xf32>
    %93 = vector.shape_cast %92 : vector<1x4x128xf32> to vector<4x128xf32>
    %94 = vector.shape_cast %91 : vector<4x128xf32> to vector<1x4x128xf32>
    tpu.vector_store %arg5[%c3_45, %c0_46, %c0_47], %94 {strides = array<i32>} : memref<4x4x128xf32, #tpu.memory_space<vmem>>, vector<1x4x128xf32>,
    return
  }
  func.func @transform_0(%arg0: i32) -> (i32, i32, i32) {
    %c0_i32 = arith.constant 0 : i32
    %c0_i32_0 = arith.constant 0 : i32
    %c0_i32_1 = arith.constant 0 : i32
    return %c0_i32, %c0_i32_0, %arg0 : i32, i32, i32
  }
  func.func @transform_1(%arg0: i32) -> (i32, i32) {
    %c0_i32 = arith.constant 0 : i32
    %c0_i32_0 = arith.constant 0 : i32
    %c0_i32_1 = arith.constant 0 : i32
    return %c0_i32, %c0_i32_0 : i32, i32
  }
  func.func @transform_2(%arg0: i32) -> (i32, i32) {
    %c0_i32 = arith.constant 0 : i32
    %c0_i32_0 = arith.constant 0 : i32
    %c0_i32_1 = arith.constant 0 : i32
    return %c0_i32, %c0_i32_0 : i32, i32
  }
  func.func @transform_3(%arg0: i32) -> (i32, i32, i32) {
    %c0_i32 = arith.constant 0 : i32
    %c0_i32_0 = arith.constant 0 : i32
    %c0_i32_1 = arith.constant 0 : i32
    %c0_i32_2 = arith.constant 0 : i32
    return %c0_i32, %c0_i32_0, %c0_i32_1 : i32, i32, i32
  }
  func.func @transform_4(%arg0: i32) -> (i32, i32, i32) {
    %c0_i32 = arith.constant 0 : i32
    %c0_i32_0 = arith.constant 0 : i32
    %c0_i32_1 = arith.constant 0 : i32
    return %c0_i32, %c0_i32_0, %arg0 : i32, i32, i32
  }
}

module attributes {stable_mosaic.version = 11 : i64} {
  func.func @kernel(%arg0: i32, %arg1: memref<4x16x128xf32, #tpu.memory_space<vmem>>, %arg2: memref<4x16xf32, #tpu.memory_space<vmem>>, %arg3: memref<4x1xf32, #tpu.memory_space<vmem>>, %arg4: memref<4x4x128xf32, #tpu.memory_space<vmem>>, %arg5: memref<4x4x128xf32, #tpu.memory_space<vmem>>) attributes {dimension_semantics = [#tpu.dimension_semantics<parallel>], iteration_bounds = array<i64: 2>, scalar_prefetch = 0 : i64, scratch_operands = 0 : i64, tpu.core_type = #tpu.core_type<tc>, window_params = [{transform_indices = @transform_0, window_bounds = array<i64: 4, 16, 128>}, {pipeline_mode = #tpu.pipeline_mode<synchronous>, transform_indices = @transform_1, window_bounds = array<i64: 4, 16>}, {pipeline_mode = #tpu.pipeline_mode<synchronous>, transform_indices = @transform_2, window_bounds = array<i64: 4, 1>}, {pipeline_mode = #tpu.pipeline_mode<synchronous>, transform_indices = @transform_3, window_bounds = array<i64: 4, 4, 128>}, {transform_indices = @transform_4, window_bounds = array<i64: 4, 4, 128>}]} {
    %c0 = arith.constant 0 : index
    %c0_0 = arith.constant 0 : index
    %0 = vector.load %arg2[%c0, %c0_0] : memref<4x16xf32, #tpu.memory_space<vmem>>, vector<4x16xf32>
    %c0_1 = arith.constant 0 : index
    %c0_2 = arith.constant 0 : index
    %1 = vector.load %arg3[%c0_1, %c0_2] : memref<4x1xf32, #tpu.memory_space<vmem>>, vector<4x1xf32>
    %c0_3 = arith.constant 0 : index
    %c0_4 = arith.constant 0 : index
    %c0_5 = arith.constant 0 : index
    %2 = vector.load %arg1[%c0_3, %c0_4, %c0_5] : memref<4x16x128xf32, #tpu.memory_space<vmem>>, vector<1x16x128xf32>
    %3 = vector.shape_cast %2 : vector<1x16x128xf32> to vector<16x128xf32>
    %cst = arith.constant dense<0.000000e+00> : vector<4x128xf32>
    %4 = tpu.matmul %0, %3, %cst {dimension_numbers = #tpu.dot_dimension_numbers<[1], [0], [0], [1], [0, 0, 1, 1], [], []>} : vector<4x16xf32>, vector<16x128xf32>, vector<4x128xf32> -> vector<4x128xf32>
    %5 = vector.broadcast %1 : vector<4x1xf32> to vector<4x128xf32>
    %6 = arith.addf %4, %5 : vector<4x128xf32>
    %c1 = arith.constant 1 : index
    %c0_6 = arith.constant 0 : index
    %c0_7 = arith.constant 0 : index
    %7 = vector.load %arg1[%c1, %c0_6, %c0_7] : memref<4x16x128xf32, #tpu.memory_space<vmem>>, vector<1x16x128xf32>
    %8 = vector.shape_cast %7 : vector<1x16x128xf32> to vector<16x128xf32>
    %cst_8 = arith.constant dense<0.000000e+00> : vector<4x128xf32>
    %9 = tpu.matmul %0, %8, %cst_8 {dimension_numbers = #tpu.dot_dimension_numbers<[1], [0], [0], [1], [0, 0, 1, 1], [], []>} : vector<4x16xf32>, vector<16x128xf32>, vector<4x128xf32> -> vector<4x128xf32>
    %10 = vector.broadcast %1 : vector<4x1xf32> to vector<4x128xf32>
    %11 = arith.addf %9, %10 : vector<4x128xf32>
    %c2 = arith.constant 2 : index
    %c0_9 = arith.constant 0 : index
    %c0_10 = arith.constant 0 : index
    %12 = vector.load %arg1[%c2, %c0_9, %c0_10] : memref<4x16x128xf32, #tpu.memory_space<vmem>>, vector<1x16x128xf32>
    %13 = vector.shape_cast %12 : vector<1x16x128xf32> to vector<16x128xf32>
    %cst_11 = arith.constant dense<0.000000e+00> : vector<4x128xf32>
    %14 = tpu.matmul %0, %13, %cst_11 {dimension_numbers = #tpu.dot_dimension_numbers<[1], [0], [0], [1], [0, 0, 1, 1], [], []>} : vector<4x16xf32>, vector<16x128xf32>, vector<4x128xf32> -> vector<4x128xf32>
    %15 = vector.broadcast %1 : vector<4x1xf32> to vector<4x128xf32>
    %16 = arith.addf %14, %15 : vector<4x128xf32>
    %c3 = arith.constant 3 : index
    %c0_12 = arith.constant 0 : index
    %c0_13 = arith.constant 0 : index
    %17 = vector.load %arg1[%c3, %c0_12, %c0_13] : memref<4x16x128xf32, #tpu.memory_space<vmem>>, vector<1x16x128xf32>
    %18 = vector.shape_cast %17 : vector<1x16x128xf32> to vector<16x128xf32>
    %cst_14 = arith.constant dense<0.000000e+00> : vector<4x128xf32>
    %19 = tpu.matmul %0, %18, %cst_14 {dimension_numbers = #tpu.dot_dimension_numbers<[1], [0], [0], [1], [0, 0, 1, 1], [], []>} : vector<4x16xf32>, vector<16x128xf32>, vector<4x128xf32> -> vector<4x128xf32>
    %20 = vector.broadcast %1 : vector<4x1xf32> to vector<4x128xf32>
    %21 = arith.addf %19, %20 : vector<4x128xf32>
    %22 = arith.mulf %6, %6 : vector<4x128xf32>
    %cst_15 = arith.constant dense<0.000000e+00> : vector<128xf32>
    %23 = vector.multi_reduction <add>, %22, %cst_15 [0] : vector<4x128xf32> to vector<128xf32>
    %24 = vector.shape_cast %23 : vector<128xf32> to vector<1x128xf32>
    %25 = arith.mulf %11, %11 : vector<4x128xf32>
    %cst_16 = arith.constant dense<0.000000e+00> : vector<128xf32>
    %26 = vector.multi_reduction <add>, %25, %cst_16 [0] : vector<4x128xf32> to vector<128xf32>
    %27 = vector.shape_cast %26 : vector<128xf32> to vector<1x128xf32>
    %28 = arith.addf %24, %27 : vector<1x128xf32>
    %29 = arith.mulf %16, %16 : vector<4x128xf32>
    %cst_17 = arith.constant dense<0.000000e+00> : vector<128xf32>
    %30 = vector.multi_reduction <add>, %29, %cst_17 [0] : vector<4x128xf32> to vector<128xf32>
    %31 = vector.shape_cast %30 : vector<128xf32> to vector<1x128xf32>
    %32 = arith.addf %28, %31 : vector<1x128xf32>
    %33 = arith.mulf %21, %21 : vector<4x128xf32>
    %cst_18 = arith.constant dense<0.000000e+00> : vector<128xf32>
    %34 = vector.multi_reduction <add>, %33, %cst_18 [0] : vector<4x128xf32> to vector<128xf32>
    %35 = vector.shape_cast %34 : vector<128xf32> to vector<1x128xf32>
    %36 = arith.addf %32, %35 : vector<1x128xf32>
    %37 = tpu.iota {dimensions = array<i32: 1>} : vector<2x128xi32>
    %38 = tpu.iota {dimensions = array<i32: 0>} : vector<2x128xi32>
    %c64_i32 = arith.constant 64 : i32
    %39 = vector.broadcast %c64_i32 : i32 to vector<2x128xi32>
    %40 = arith.muli %38, %39 : vector<2x128xi32>
    %41 = arith.cmpi sge, %37, %40 : vector<2x128xi32>
    %c64_i32_19 = arith.constant 64 : i32
    %42 = vector.broadcast %c64_i32_19 : i32 to vector<2x128xi32>
    %43 = arith.addi %40, %42 : vector<2x128xi32>
    %44 = arith.cmpi slt, %37, %43 : vector<2x128xi32>
    %45 = arith.andi %41, %44 : vector<2x128xi1>
    %46 = arith.extui %45 : vector<2x128xi1> to vector<2x128xi32>
    %47 = arith.sitofp %46 : vector<2x128xi32> to vector<2x128xf32>
    %cst_20 = arith.constant dense<0.000000e+00> : vector<1x2xf32>
    %48 = tpu.matmul %36, %47, %cst_20 {dimension_numbers = #tpu.dot_dimension_numbers<[1], [1], [0], [0], [0, 0, 1, 0], [], []>} : vector<1x128xf32>, vector<2x128xf32>, vector<1x2xf32> -> vector<1x2xf32>
    %cst_21 = arith.constant 9.765625E-4 : f32
    %49 = vector.broadcast %cst_21 : f32 to vector<1x2xf32>
    %50 = arith.mulf %48, %49 : vector<1x2xf32>
    %cst_22 = arith.constant 1.1920929E-7 : f32
    %51 = vector.broadcast %cst_22 : f32 to vector<1x2xf32>
    %52 = arith.addf %50, %51 : vector<1x2xf32>
    %53 = math.rsqrt %52 : vector<1x2xf32>
    %cst_23 = arith.constant dense<0.000000e+00> : vector<1x128xf32>
    %54 = tpu.matmul %53, %47, %cst_23 {dimension_numbers = #tpu.dot_dimension_numbers<[1], [0], [0], [1], [0, 0, 1, 1], [], []>} : vector<1x2xf32>, vector<2x128xf32>, vector<1x128xf32> -> vector<1x128xf32>
    %55 = vector.broadcast %54 : vector<1x128xf32> to vector<4x128xf32>
    %56 = arith.mulf %6, %55 : vector<4x128xf32>
    %c0_24 = arith.constant 0 : index
    %c0_25 = arith.constant 0 : index
    %c0_26 = arith.constant 0 : index
    %57 = vector.load %arg4[%c0_24, %c0_25, %c0_26] : memref<4x4x128xf32, #tpu.memory_space<vmem>>, vector<1x4x128xf32>
    %58 = vector.shape_cast %57 : vector<1x4x128xf32> to vector<4x128xf32>
    %59 = arith.mulf %56, %58 : vector<4x128xf32>
    %60 = vector.broadcast %54 : vector<1x128xf32> to vector<4x128xf32>
    %61 = arith.mulf %11, %60 : vector<4x128xf32>
    %c1_27 = arith.constant 1 : index
    %c0_28 = arith.constant 0 : index
    %c0_29 = arith.constant 0 : index
    %62 = vector.load %arg4[%c1_27, %c0_28, %c0_29] : memref<4x4x128xf32, #tpu.memory_space<vmem>>, vector<1x4x128xf32>
    %63 = vector.shape_cast %62 : vector<1x4x128xf32> to vector<4x128xf32>
    %64 = arith.mulf %61, %63 : vector<4x128xf32>
    %65 = vector.broadcast %54 : vector<1x128xf32> to vector<4x128xf32>
    %66 = arith.mulf %16, %65 : vector<4x128xf32>
    %c2_30 = arith.constant 2 : index
    %c0_31 = arith.constant 0 : index
    %c0_32 = arith.constant 0 : index
    %67 = vector.load %arg4[%c2_30, %c0_31, %c0_32] : memref<4x4x128xf32, #tpu.memory_space<vmem>>, vector<1x4x128xf32>
    %68 = vector.shape_cast %67 : vector<1x4x128xf32> to vector<4x128xf32>
    %69 = arith.mulf %66, %68 : vector<4x128xf32>
    %70 = vector.broadcast %54 : vector<1x128xf32> to vector<4x128xf32>
    %71 = arith.mulf %21, %70 : vector<4x128xf32>
    %c3_33 = arith.constant 3 : index
    %c0_34 = arith.constant 0 : index
    %c0_35 = arith.constant 0 : index
    %72 = vector.load %arg4[%c3_33, %c0_34, %c0_35] : memref<4x4x128xf32, #tpu.memory_space<vmem>>, vector<1x4x128xf32>
    %73 = vector.shape_cast %72 : vector<1x4x128xf32> to vector<4x128xf32>
    %74 = arith.mulf %71, %73 : vector<4x128xf32>
    %75 = arith.addf %59, %64 : vector<4x128xf32>
    %76 = arith.subf %59, %64 : vector<4x128xf32>
    %77 = arith.addf %69, %74 : vector<4x128xf32>
    %78 = arith.subf %69, %74 : vector<4x128xf32>
    %79 = arith.addf %75, %77 : vector<4x128xf32>
    %c0_36 = arith.constant 0 : index
    %c0_37 = arith.constant 0 : index
    %c0_38 = arith.constant 0 : index
    %80 = vector.load %arg5[%c0_36, %c0_37, %c0_38] : memref<4x4x128xf32, #tpu.memory_space<vmem>>, vector<1x4x128xf32>
    %81 = vector.shape_cast %80 : vector<1x4x128xf32> to vector<4x128xf32>
    %82 = vector.shape_cast %79 : vector<4x128xf32> to vector<1x4x128xf32>
    tpu.vector_store %arg5[%c0_36, %c0_37, %c0_38], %82 {strides = array<i32>} : memref<4x4x128xf32, #tpu.memory_space<vmem>>, vector<1x4x128xf32>,
    %83 = arith.addf %76, %78 : vector<4x128xf32>
    %c1_39 = arith.constant 1 : index
    %c0_40 = arith.constant 0 : index
    %c0_41 = arith.constant 0 : index
    %84 = vector.load %arg5[%c1_39, %c0_40, %c0_41] : memref<4x4x128xf32, #tpu.memory_space<vmem>>, vector<1x4x128xf32>
    %85 = vector.shape_cast %84 : vector<1x4x128xf32> to vector<4x128xf32>
    %86 = vector.shape_cast %83 : vector<4x128xf32> to vector<1x4x128xf32>
    tpu.vector_store %arg5[%c1_39, %c0_40, %c0_41], %86 {strides = array<i32>} : memref<4x4x128xf32, #tpu.memory_space<vmem>>, vector<1x4x128xf32>,
    %87 = arith.subf %75, %77 : vector<4x128xf32>
    %c2_42 = arith.constant 2 : index
    %c0_43 = arith.constant 0 : index
    %c0_44 = arith.constant 0 : index
    %88 = vector.load %arg5[%c2_42, %c0_43, %c0_44] : memref<4x4x128xf32, #tpu.memory_space<vmem>>, vector<1x4x128xf32>
    %89 = vector.shape_cast %88 : vector<1x4x128xf32> to vector<4x128xf32>
    %90 = vector.shape_cast %87 : vector<4x128xf32> to vector<1x4x128xf32>
    tpu.vector_store %arg5[%c2_42, %c0_43, %c0_44], %90 {strides = array<i32>} : memref<4x4x128xf32, #tpu.memory_space<vmem>>, vector<1x4x128xf32>,
    %91 = arith.subf %76, %78 : vector<4x128xf32>
    %c3_45 = arith.constant 3 : index
    %c0_46 = arith.constant 0 : index
    %c0_47 = arith.constant 0 : index
    %92 = vector.load %arg5[%c3_45, %c0_46, %c0_47] : memref<4x4x128xf32, #tpu.memory_space<vmem>>, vector<1x4x128xf32>
    %93 = vector.shape_cast %92 : vector<1x4x128xf32> to vector<4x128xf32>
    %94 = vector.shape_cast %91 : vector<4x128xf32> to vector<1x4x128xf32>
    tpu.vector_store %arg5[%c3_45, %c0_46, %c0_47], %94 {strides = array<i32>} : memref<4x4x128xf32, #tpu.memory_space<vmem>>, vector<1x4x128xf32>,
    return
  }
  func.func @transform_0(%arg0: i32) -> (i32, i32, i32) {
    %c0_i32 = arith.constant 0 : i32
    %c0_i32_0 = arith.constant 0 : i32
    %c0_i32_1 = arith.constant 0 : i32
    return %c0_i32, %c0_i32_0, %arg0 : i32, i32, i32
  }
  func.func @transform_1(%arg0: i32) -> (i32, i32) {
    %c0_i32 = arith.constant 0 : i32
    %c0_i32_0 = arith.constant 0 : i32
    %c0_i32_1 = arith.constant 0 : i32
    return %c0_i32, %c0_i32_0 : i32, i32
  }
  func.func @transform_2(%arg0: i32) -> (i32, i32) {
    %c0_i32 = arith.constant 0 : i32
    %c0_i32_0 = arith.constant 0 : i32
    %c0_i32_1 = arith.constant 0 : i32
    return %c0_i32, %c0_i32_0 : i32, i32
  }
  func.func @transform_3(%arg0: i32) -> (i32, i32, i32) {
    %c0_i32 = arith.constant 0 : i32
    %c0_i32_0 = arith.constant 0 : i32
    %c0_i32_1 = arith.constant 0 : i32
    %c0_i32_2 = arith.constant 0 : i32
    return %c0_i32, %c0_i32_0, %c0_i32_1 : i32, i32, i32
  }
  func.func @transform_4(%arg0: i32) -> (i32, i32, i32) {
    %c0_i32 = arith.constant 0 : i32
    %c0_i32_0 = arith.constant 0 : i32
    %c0_i32_1 = arith.constant 0 : i32
    return %c0_i32, %c0_i32_0, %arg0 : i32, i32, i32
  }
}

</mosaic_0001>

<llo_original>
// kernel: tpu_custom_call.1
$region0: #{tpu_custom_call.1}
  #allocation0 [shape = 'u32[]', space=smem, size = 0x4, offset = 0x4, fixed_abs, tag = 'smem constant byte address 0x4 - core index']
  #allocation1 [shape = 'u32[144,128]{1,0:T(1,128)}', space=vmem, size = 0x12000, scoped, tag = 'internal scratch']
  %s0 = inlined_call_operand.hbm [shape: f32[4,16,256], index: 0, kind: input, shape index: {}]
  %s1 = inlined_call_operand.vmem [shape: f32[4,16], index: 1, kind: input, shape index: {}]
  %s2 = inlined_call_operand.vmem [shape: f32[4,1], index: 2, kind: input, shape index: {}]
  %s3 = inlined_call_operand.hbm [shape: f32[4,4,128], index: 3, kind: input, shape index: {}]
  %s4 = inlined_call_operand.hbm [shape: f32[4,4,256], index: 4, kind: output, shape index: {}]
  %s5 = sld [smem:[#allocation0]]
  $region57: #{tpu_custom_call.1} parent=0
    _
  %s7 = ssub.s32 1, %s5
  %s8 = scalar_select 0, %s7, %s5
  $region1: #{tpu_custom_call.1} parent=0
    #allocation2 [shape = 'u8[65536]{0}', space=vmem, size = 0x10000, scoped, tag = 'input window, operand 0']
    #allocation3 [shape = 's32[2]{0}', space=sflag, size = 0x8, scoped, tag = 'scoped memory for tpu_custom_call.1']
    #allocation4 [shape = 's32[2]{0}', space=sflag, size = 0x8, scoped, tag = 'scoped memory for tpu_custom_call.1']
    #allocation5 [shape = 'u8[8192]{0}', space=vmem, size = 0x2000, scoped, tag = 'input window, operand 3, single buffered']
    #allocation6 [shape = 's32[1]{0}', space=sflag, size = 0x4, scoped, tag = 'scoped memory for tpu_custom_call.1']
    #allocation7 [shape = 'u8[16384]{0}', space=vmem, size = 0x4000, scoped, tag = 'output window, operand 0']
    %9 = vsyncpa [#allocation3], 0
    %s10 = scalar_lea.sflag [#allocation3], 1
    %11 = vsyncpa %s10, 0
    %12 = vsyncpa [#allocation6], 0
    %13 = vsyncpa [#allocation4], 0
    %s14 = scalar_lea.sflag [#allocation4], 1
    %15 = vsyncpa %s14, 0
    loop: start=0, step=1, limit=4
    $region2: #{tpu_custom_call.1} parent=1 // loop_pre_header
      _
    $region3: #{tpu_custom_call.1} parent=1 // loop_header
      %s17 = sphi 0, %s21
      %p18 = scmp.ge.s32.totalorder %s17, 4
      %s27 = sphi 0, %s29
      %s30 = sphi 0, %s27
      %s31 = sphi 0, %s30
      %s47 = sphi 0, %s31
      %s51 = sphi 0, %s51
      %s53 = sphi 0, %s51
      %s54 = sphi 0, %s53
      %s68 = sphi 0, %s54
      %s72 = sphi 0, %s72
      %s74 = sphi 0, %s72
      %s75 = sphi 0, %s74
      %s89 = sphi 0, %s75
      %s93 = sphi 0, %s93
      %s95 = sphi 0, %s93
      %s96 = sphi 0, %s95
      %s110 = sphi 0, %s96
      %s116 = sphi 0, %s118
      %s119 = sphi 0, %s116
      %s120 = sphi 0, %s119
      %s136 = sphi 0, %s120
    $region4: #{tpu_custom_call.1} parent=1 // loop_header_branch
      %20 = sbr.rel (%p18) target = $region8
    $region5: #{tpu_custom_call.1} parent=1 // loop_body
      %s22 = ssub.s32 %s17, 1
      %s23 = ssub.s32 %s17, 2
      %s24 = sadd.s32 %s17, 1
      %s25 = ssub.s32 %s17, %s24
      %p26 = scmp.eq.s32.totalorder %s25, 0
      %s28 = sadd.s32 %s27, 1
      %s29 = scalar_select %p26, %s27, %s28
      %p32 = pneg %p26
      %p33 = scmp.eq.s32.totalorder %s17, 1
      %p34 = por %p32, %p33
      %p35 = scmp.ne.s32.totalorder %s27, %s30
      %p36 = scmp.eq.s32.totalorder %s17, 0
      %p37 = por %p35, %p36
      %p38 = scmp.ne.s32.totalorder %s27, %s30
      %p39 = scmp.eq.s32.totalorder %s22, 1
      %p40 = por %p38, %p39
      %p41 = scmp.ne.s32.totalorder %s30, %s31
      %p42 = scmp.eq.s32.totalorder %s22, 0
      %p43 = por %p41, %p42
      %p44 = scmp.ne.s32.totalorder %s30, %s31
      %p45 = scmp.eq.s32.totalorder %s23, 1
      %p46 = por %p44, %p45
      %p48 = scmp.ne.s32.totalorder %s31, %s47
      %p49 = scmp.eq.s32.totalorder %s23, 0
      %p50 = por %p48, %p49
      %s52 = sadd.s32 %s51, 1
      %p55 = scmp.eq.s32.totalorder %s17, 1
      %p56 = scmp.ne.s32.totalorder %s51, %s53
      %p57 = scmp.eq.s32.totalorder %s17, 0
      %p58 = por %p56, %p57
      %p59 = scmp.ne.s32.totalorder %s51, %s53
      %p60 = scmp.eq.s32.totalorder %s22, 1
      %p61 = por %p59, %p60
      %p62 = scmp.ne.s32.totalorder %s53, %s54
      %p63 = scmp.eq.s32.totalorder %s22, 0
      %p64 = por %p62, %p63
      %p65 = scmp.ne.s32.totalorder %s53, %s54
      %p66 = scmp.eq.s32.totalorder %s23, 1
      %p67 = por %p65, %p66
      %p69 = scmp.ne.s32.totalorder %s54, %s68
      %p70 = scmp.eq.s32.totalorder %s23, 0
      %p71 = por %p69, %p70
      %s73 = sadd.s32 %s72, 1
      %p76 = scmp.eq.s32.totalorder %s17, 1
      %p77 = scmp.ne.s32.totalorder %s72, %s74
      %p78 = scmp.eq.s32.totalorder %s17, 0
      %p79 = por %p77, %p78
      %p80 = scmp.ne.s32.totalorder %s72, %s74
      %p81 = scmp.eq.s32.totalorder %s22, 1
      %p82 = por %p80, %p81
      %p83 = scmp.ne.s32.totalorder %s74, %s75
      %p84 = scmp.eq.s32.totalorder %s22, 0
      %p85 = por %p83, %p84
      %p86 = scmp.ne.s32.totalorder %s74, %s75
      %p87 = scmp.eq.s32.totalorder %s23, 1
      %p88 = por %p86, %p87
      %p90 = scmp.ne.s32.totalorder %s75, %s89
      %p91 = scmp.eq.s32.totalorder %s23, 0
      %p92 = por %p90, %p91
      %s94 = sadd.s32 %s93, 1
      %p97 = scmp.eq.s32.totalorder %s17, 1
      %p98 = scmp.ne.s32.totalorder %s93, %s95
      %p99 = scmp.eq.s32.totalorder %s17, 0
      %p100 = por %p98, %p99
      %p101 = scmp.ne.s32.totalorder %s93, %s95
      %p102 = scmp.eq.s32.totalorder %s22, 1
      %p103 = por %p101, %p102
      %p104 = scmp.ne.s32.totalorder %s95, %s96
      %p105 = scmp.eq.s32.totalorder %s22, 0
      %p106 = por %p104, %p105
      %p107 = scmp.ne.s32.totalorder %s95, %s96
      %p108 = scmp.eq.s32.totalorder %s23, 1
      %p109 = por %p107, %p108
      %p111 = scmp.ne.s32.totalorder %s96, %s110
      %p112 = scmp.eq.s32.totalorder %s23, 0
      %p113 = por %p111, %p112
      %s114 = ssub.s32 %s17, %s24
      %p115 = scmp.eq.s32.totalorder %s114, 0
      %s117 = sadd.s32 %s116, 1
      %s118 = scalar_select %p115, %s116, %s117
      %p121 = pneg %p115
      %p122 = scmp.eq.s32.totalorder %s17, 1
      %p123 = por %p121, %p122
      %p124 = scmp.ne.s32.totalorder %s116, %s119
      %p125 = scmp.eq.s32.totalorder %s17, 0
      %p126 = por %p124, %p125
      %p127 = scmp.ne.s32.totalorder %s116, %s119
      %p128 = scmp.eq.s32.totalorder %s22, 1
      %p129 = por %p127, %p128
      %p130 = scmp.ne.s32.totalorder %s119, %s120
      %p131 = scmp.eq.s32.totalorder %s22, 0
      %p132 = por %p130, %p131
      %p133 = scmp.ne.s32.totalorder %s119, %s120
      %p134 = scmp.eq.s32.totalorder %s23, 1
      %p135 = por %p133, %p134
      %p137 = scmp.ne.s32.totalorder %s120, %s136
      %p138 = scmp.eq.s32.totalorder %s23, 0
      %p139 = por %p137, %p138
      %p140 = scmp.le.s32.totalorder 1, %s17
      %p141 = scmp.lt.s32.totalorder %s17, 3
      %p142 = pnand %p140, %p141
      %p143 = pneg %p142
      // Predicated region
      $region9: #{tpu_custom_call.1} parent=5 // pred_check
        _
      $region10: #{tpu_custom_call.1} parent=5 // pred_check_branch
        %145 = sbr.rel (%p142) target = $region12
      $region11: #{tpu_custom_call.1} parent=5 // pred_region
        %s146 = ssub.s32 %s17, 1
        // Predicated region
        $region13: #{tpu_custom_call.1} parent=11 // pred_check
          %p147 = pneg %p64
        $region14: #{tpu_custom_call.1} parent=11 // pred_check_branch
          %149 = sbr.rel (%p147) target = $region16
        $region15: #{tpu_custom_call.1} parent=11 // pred_region
          _
        $region16: #{tpu_custom_call.1} parent=11 // pred_fallthru
          _
        // Predicated region
        $region17: #{tpu_custom_call.1} parent=11 // pred_check
          %p150 = pneg %p85
        $region18: #{tpu_custom_call.1} parent=11 // pred_check_branch
          %152 = sbr.rel (%p150) target = $region20
        $region19: #{tpu_custom_call.1} parent=11 // pred_region
          _
        $region20: #{tpu_custom_call.1} parent=11 // pred_fallthru
          _
        // Predicated region
        $region21: #{tpu_custom_call.1} parent=11 // pred_check
          %p153 = pneg %p106
        $region22: #{tpu_custom_call.1} parent=11 // pred_check_branch
          %155 = sbr.rel (%p153) target = $region24
        $region23: #{tpu_custom_call.1} parent=11 // pred_region
          %s157 = ssub.s32 256, 256
          %158 = vsyncadd [#allocation6], %s157
          %s159 = sshll.u32 [#allocation5], 4
          %s160 = int_to_ptr.vmem [resolvable:$true] %s159
          %165 = dma.hbm_to_vmem [thread:$0]  %s3, 256, %s160, [#allocation6], 64, 64, 4
        $region24: #{tpu_custom_call.1} parent=11 // pred_fallthru
          _
      $region12: #{tpu_custom_call.1} parent=5 // pred_fallthru
        _
      %p166 = scmp.lt.s32.totalorder %s17, 2
      // Predicated region
      $region25: #{tpu_custom_call.1} parent=5 // pred_check
        %p167 = pneg %p166
      $region26: #{tpu_custom_call.1} parent=5 // pred_check_branch
        %169 = sbr.rel (%p167) target = $region28
      $region27: #{tpu_custom_call.1} parent=5 // pred_region
        // Predicated region
        $region29: #{tpu_custom_call.1} parent=27 // pred_check
          %p170 = pneg %p37
        $region30: #{tpu_custom_call.1} parent=27 // pred_check_branch
          %172 = sbr.rel (%p170) target = $region32
        $region31: #{tpu_custom_call.1} parent=27 // pred_region
          %s173 = sand.u32 %s27, 1
          %s174 = scalar_lea.sflag [#allocation3], %s173
          %s175 = sand.u32 %s27, 1
          %s176 = smul.addr %s175, 64
          %s177 = scalar_lea.vmem [#allocation2], %s176
          %s179 = ssub.s32 1024, 1024
          %180 = vsyncadd %s174, %s179
          %s181 = smul.addr %s17, 128
          %s182 = scalar_lea.hbm %s0, %s181
          %s183 = sshll.u32 %s177, 4
          %s184 = int_to_ptr.vmem [resolvable:$true] %s183
          %189 = dma.hbm_to_vmem [thread:$0]  %s182, 1024, %s184, %s174, 256, 128, 8
        $region32: #{tpu_custom_call.1} parent=27 // pred_fallthru
          _
      $region28: #{tpu_custom_call.1} parent=5 // pred_fallthru
        _
      %p190 = scmp.le.s32.totalorder 1, %s17
      %p191 = scmp.lt.s32.totalorder %s17, 3
      %p192 = pnand %p190, %p191
      %p193 = pneg %p192
      // Predicated region
      $region33: #{tpu_custom_call.1} parent=5 // pred_check
        _
      $region34: #{tpu_custom_call.1} parent=5 // pred_check_branch
        %195 = sbr.rel (%p192) target = $region36
      $region35: #{tpu_custom_call.1} parent=5 // pred_region
        %s196 = ssub.s32 %s17, 1
        %s197 = sand.u32 %s30, 1
        %s198 = scalar_lea.sflag [#allocation3], %s197
        %s199 = sand.u32 %s30, 1
        %s200 = smul.addr %s199, 64
        %s201 = scalar_lea.vmem [#allocation2], %s200
        // Predicated region
        $region37: #{tpu_custom_call.1} parent=35 // pred_check
          %p202 = pneg %p43
        $region38: #{tpu_custom_call.1} parent=35 // pred_check_branch
          %204 = sbr.rel (%p202) target = $region40
        $region39: #{tpu_custom_call.1} parent=35 // pred_region
          %205 = dma.done %s198, 1024
        $region40: #{tpu_custom_call.1} parent=35 // pred_fallthru
          _
        // Predicated region
        $region41: #{tpu_custom_call.1} parent=35 // pred_check
          %p206 = pneg %p106
        $region42: #{tpu_custom_call.1} parent=35 // pred_check_branch
          %208 = sbr.rel (%p206) target = $region44
        $region43: #{tpu_custom_call.1} parent=35 // pred_region
          %209 = dma.done [#allocation6], 256
        $region44: #{tpu_custom_call.1} parent=35 // pred_fallthru
          _
        %s210 = sand.u32 %s30, 1
        %s211 = scalar_lea.sflag [#allocation3], %s210
        %s212 = sand.u32 %s30, 1
        %s213 = smul.addr %s212, 64
        %s214 = scalar_lea.vmem [#allocation2], %s213
        %p215 = pneg %p43
        %p216 = pneg %p40
        %p217 = pneg %p64
        %p218 = pneg %p61
        %p219 = pneg %p85
        %p220 = pneg %p82
        %p221 = pneg %p106
        %p222 = pneg %p103
        %p223 = pneg %p132
        %p224 = pneg %p129
        %s225 = sand.u32 %s119, 1
        %s226 = scalar_lea.sflag [#allocation4], %s225
        %s227 = sand.u32 %s119, 1
        %s228 = smul.addr %s227, 16
        %s229 = scalar_lea.vmem [#allocation7], %s228
        %v230 = vld [vmem:[%s1] sm:$0xf]
        %v231 = vld [vmem:[%s2] sm:$0xf]
        %v232 = vld [vmem:[%s201] sm:$0xff]
        %v233 = vld [vmem:[%s201 + $0x8] sm:$0xff]
        %235 = vset.pattern.permute.xlu0 0
        %236 = vperm.xlu0 %235, %v231
        %v237 = vpop.permute.xlu0 %236
        %vm239 = vcmask 130048
        %v241 = vsel %vm239, %v230, 0
        %243 = vmatprep.subr.mxu0 0.0
        %244 = vmatpush1.msra.mxu0 0.0
        %245 = vmatprep.subr.mxu0 0.0
        %246 = vmatpush1.msra.mxu0 0.0
        %247 = vmatprep.subr.mxu0 0.0
        %248 = vmatpush1.msra.mxu0 0.0
        %249 = vmatprep.subr.mxu0 0.0
        %250 = vmatpush1.msra.mxu0 0.0
        %251 = vmatprep.subr.mxu0 0.0
        %252 = vmatpush1.msra.mxu0 0.0
        %253 = vmatprep.subr.mxu0 0.0
        %254 = vmatpush1.msra.mxu0 0.0
        %255 = vmatprep.subr.mxu0 0.0
        %256 = vmatpush1.msra.mxu0 0.0
        %257 = vmatprep.subr.mxu0 0.0
        %258 = vmatpush1.msra.mxu0 0.0
        %259 = vmatprep.subr.mxu0 0.0
        %260 = vmatpush1.msra.mxu0 0.0
        %261 = vmatprep.subr.mxu0 0.0
        %262 = vmatpush1.msra.mxu0 0.0
        %263 = vmatprep.subr.mxu0 0.0
        %264 = vmatpush1.msra.mxu0 0.0
        %265 = vmatprep.subr.mxu0 0.0
        %266 = vmatpush1.msra.mxu0 0.0
        %267 = vmatprep.subr.mxu0 0.0
        %268 = vmatpush1.msra.mxu0 0.0
        %269 = vmatprep.subr.mxu0 0.0
        %270 = vmatpush1.msra.mxu0 0.0
        %271 = vmatprep.subr.mxu0 0.0
        %272 = vmatpush1.msra.mxu0 %v233
        %273 = vmatprep.subr.mxu0 0.0
        %274 = vmatpush1.msra.mxu0 %v232
        %275 = vmatprep.subr.mxu0 0.0
        %276 = vmatpush2.msra.mxu0 0.0
        %277 = vmatprep.subr.mxu0 0.0
        %278 = vmatpush2.msra.mxu0 0.0
        %279 = vmatprep.subr.mxu0 0.0
        %280 = vmatpush2.msra.mxu0 0.0
        %281 = vmatprep.subr.mxu0 0.0
        %282 = vmatpush2.msra.mxu0 0.0
        %283 = vmatprep.subr.mxu0 0.0
        %284 = vmatpush2.msra.mxu0 0.0
        %285 = vmatprep.subr.mxu0 0.0
        %286 = vmatpush2.msra.mxu0 0.0
        %287 = vmatprep.subr.mxu0 0.0
        %288 = vmatpush2.msra.mxu0 0.0
        %289 = vmatprep.subr.mxu0 0.0
        %290 = vmatpush2.msra.mxu0 0.0
        %291 = vmatprep.subr.mxu0 0.0
        %292 = vmatpush2.msra.mxu0 0.0
        %293 = vmatprep.subr.mxu0 0.0
        %294 = vmatpush2.msra.mxu0 0.0
        %295 = vmatprep.subr.mxu0 0.0
        %296 = vmatpush2.msra.mxu0 0.0
        %297 = vmatprep.subr.mxu0 0.0
        %298 = vmatpush2.msra.mxu0 0.0
        %299 = vmatprep.subr.mxu0 0.0
        %300 = vmatpush2.msra.mxu0 0.0
        %301 = vmatprep.subr.mxu0 0.0
        %302 = vmatpush2.msra.mxu0 0.0
        %303 = vmatprep.subr.mxu0 0.0
        %304 = vmatpush2.msra.mxu0 0.0
        %305 = vmatprep.subr.mxu0 0.0
        %306 = vmatpush2.msra.mxu0 0.0
        %307 = vmatprep.mubr.f32.mxu0 0.0
        %308 = vmatmul.mubr.f32.gmra.mxu0 %v241
        %v309 = vpop.f32.mrf.mxu0
        %v310 = vadd.f32 %v237, %v309
        %v311 = vpop.f32.mrf.mxu0
        %312 = vdwg.mxu0
        %s313 = scalar_lea.vmem %s201, 16 [#allocation2]
        %v314 = vld [vmem:[%s313] sm:$0xff]
        %v315 = vld [vmem:[%s313 + $0x8] sm:$0xff]
        %316 = vmatprep.subr.mxu0 0.0
        %317 = vmatpush1.msra.mxu0 0.0
        %318 = vmatprep.subr.mxu0 0.0
        %319 = vmatpush1.msra.mxu0 0.0
        %320 = vmatprep.subr.mxu0 0.0
        %321 = vmatpush1.msra.mxu0 0.0
        %322 = vmatprep.subr.mxu0 0.0
        %323 = vmatpush1.msra.mxu0 0.0
        %324 = vmatprep.subr.mxu0 0.0
        %325 = vmatpush1.msra.mxu0 0.0
        %326 = vmatprep.subr.mxu0 0.0
        %327 = vmatpush1.msra.mxu0 0.0
        %328 = vmatprep.subr.mxu0 0.0
        %329 = vmatpush1.msra.mxu0 0.0
        %330 = vmatprep.subr.mxu0 0.0
        %331 = vmatpush1.msra.mxu0 0.0
        %332 = vmatprep.subr.mxu0 0.0
        %333 = vmatpush1.msra.mxu0 0.0
        %334 = vmatprep.subr.mxu0 0.0
        %335 = vmatpush1.msra.mxu0 0.0
        %336 = vmatprep.subr.mxu0 0.0
        %337 = vmatpush1.msra.mxu0 0.0
        %338 = vmatprep.subr.mxu0 0.0
        %339 = vmatpush1.msra.mxu0 0.0
        %340 = vmatprep.subr.mxu0 0.0
        %341 = vmatpush1.msra.mxu0 0.0
        %342 = vmatprep.subr.mxu0 0.0
        %343 = vmatpush1.msra.mxu0 0.0
        %344 = vmatprep.subr.mxu0 0.0
        %345 = vmatpush1.msra.mxu0 %v315
        %346 = vmatprep.subr.mxu0 0.0
        %347 = vmatpush1.msra.mxu0 %v314
        %348 = vmatprep.subr.mxu0 0.0
        %349 = vmatpush2.msra.mxu0 0.0
        %350 = vmatprep.subr.mxu0 0.0
        %351 = vmatpush2.msra.mxu0 0.0
        %352 = vmatprep.subr.mxu0 0.0
        %353 = vmatpush2.msra.mxu0 0.0
        %354 = vmatprep.subr.mxu0 0.0
        %355 = vmatpush2.msra.mxu0 0.0
        %356 = vmatprep.subr.mxu0 0.0
        %357 = vmatpush2.msra.mxu0 0.0
        %358 = vmatprep.subr.mxu0 0.0
        %359 = vmatpush2.msra.mxu0 0.0
        %360 = vmatprep.subr.mxu0 0.0
        %361 = vmatpush2.msra.mxu0 0.0
        %362 = vmatprep.subr.mxu0 0.0
        %363 = vmatpush2.msra.mxu0 0.0
        %364 = vmatprep.subr.mxu0 0.0
        %365 = vmatpush2.msra.mxu0 0.0
        %366 = vmatprep.subr.mxu0 0.0
        %367 = vmatpush2.msra.mxu0 0.0
        %368 = vmatprep.subr.mxu0 0.0
        %369 = vmatpush2.msra.mxu0 0.0
        %370 = vmatprep.subr.mxu0 0.0
        %371 = vmatpush2.msra.mxu0 0.0
        %372 = vmatprep.subr.mxu0 0.0
        %373 = vmatpush2.msra.mxu0 0.0
        %374 = vmatprep.subr.mxu0 0.0
        %375 = vmatpush2.msra.mxu0 0.0
        %376 = vmatprep.subr.mxu0 0.0
        %377 = vmatpush2.msra.mxu0 0.0
        %378 = vmatprep.subr.mxu0 0.0
        %379 = vmatpush2.msra.mxu0 0.0
        %380 = vmatprep.mubr.f32.mxu0 0.0
        %381 = vmatmul.mubr.f32.gmra.mxu0 %v241
        %v382 = vpop.f32.mrf.mxu0
        %v383 = vadd.f32 %v237, %v382
        %v384 = vpop.f32.mrf.mxu0
        %385 = vdwg.mxu0
        %s386 = scalar_lea.vmem %s201, 32 [#allocation2]
        %v387 = vld [vmem:[%s386] sm:$0xff]
        %v388 = vld [vmem:[%s386 + $0x8] sm:$0xff]
        %389 = vmatprep.subr.mxu0 0.0
        %390 = vmatpush1.msra.mxu0 0.0
        %391 = vmatprep.subr.mxu0 0.0
        %392 = vmatpush1.msra.mxu0 0.0
        %393 = vmatprep.subr.mxu0 0.0
        %394 = vmatpush1.msra.mxu0 0.0
        %395 = vmatprep.subr.mxu0 0.0
        %396 = vmatpush1.msra.mxu0 0.0
        %397 = vmatprep.subr.mxu0 0.0
        %398 = vmatpush1.msra.mxu0 0.0
        %399 = vmatprep.subr.mxu0 0.0
        %400 = vmatpush1.msra.mxu0 0.0
        %401 = vmatprep.subr.mxu0 0.0
        %402 = vmatpush1.msra.mxu0 0.0
        %403 = vmatprep.subr.mxu0 0.0
        %404 = vmatpush1.msra.mxu0 0.0
        %405 = vmatprep.subr.mxu0 0.0
        %406 = vmatpush1.msra.mxu0 0.0
        %407 = vmatprep.subr.mxu0 0.0
        %408 = vmatpush1.msra.mxu0 0.0
        %409 = vmatprep.subr.mxu0 0.0
        %410 = vmatpush1.msra.mxu0 0.0
        %411 = vmatprep.subr.mxu0 0.0
        %412 = vmatpush1.msra.mxu0 0.0
        %413 = vmatprep.subr.mxu0 0.0
        %414 = vmatpush1.msra.mxu0 0.0
        %415 = vmatprep.subr.mxu0 0.0
        %416 = vmatpush1.msra.mxu0 0.0
        %417 = vmatprep.subr.mxu0 0.0
        %418 = vmatpush1.msra.mxu0 %v388
        %419 = vmatprep.subr.mxu0 0.0
        %420 = vmatpush1.msra.mxu0 %v387
        %421 = vmatprep.subr.mxu0 0.0
        %422 = vmatpush2.msra.mxu0 0.0
        %423 = vmatprep.subr.mxu0 0.0
        %424 = vmatpush2.msra.mxu0 0.0
        %425 = vmatprep.subr.mxu0 0.0
        %426 = vmatpush2.msra.mxu0 0.0
        %427 = vmatprep.subr.mxu0 0.0
        %428 = vmatpush2.msra.mxu0 0.0
        %429 = vmatprep.subr.mxu0 0.0
        %430 = vmatpush2.msra.mxu0 0.0
        %431 = vmatprep.subr.mxu0 0.0
        %432 = vmatpush2.msra.mxu0 0.0
        %433 = vmatprep.subr.mxu0 0.0
        %434 = vmatpush2.msra.mxu0 0.0
        %435 = vmatprep.subr.mxu0 0.0
        %436 = vmatpush2.msra.mxu0 0.0
        %437 = vmatprep.subr.mxu0 0.0
        %438 = vmatpush2.msra.mxu0 0.0
        %439 = vmatprep.subr.mxu0 0.0
        %440 = vmatpush2.msra.mxu0 0.0
        %441 = vmatprep.subr.mxu0 0.0
        %442 = vmatpush2.msra.mxu0 0.0
        %443 = vmatprep.subr.mxu0 0.0
        %444 = vmatpush2.msra.mxu0 0.0
        %445 = vmatprep.subr.mxu0 0.0
        %446 = vmatpush2.msra.mxu0 0.0
        %447 = vmatprep.subr.mxu0 0.0
        %448 = vmatpush2.msra.mxu0 0.0
        %449 = vmatprep.subr.mxu0 0.0
        %450 = vmatpush2.msra.mxu0 0.0
        %451 = vmatprep.subr.mxu0 0.0
        %452 = vmatpush2.msra.mxu0 0.0
        %453 = vmatprep.mubr.f32.mxu0 0.0
        %454 = vmatmul.mubr.f32.gmra.mxu0 %v241
        %v455 = vpop.f32.mrf.mxu0
        %v456 = vadd.f32 %v237, %v455
        %v457 = vpop.f32.mrf.mxu0
        %458 = vdwg.mxu0
        %s459 = scalar_lea.vmem %s201, 48 [#allocation2]
        %v460 = vld [vmem:[%s459] sm:$0xff]
        %v461 = vld [vmem:[%s459 + $0x8] sm:$0xff]
        %462 = vmatprep.subr.mxu0 0.0
        %463 = vmatpush1.msra.mxu0 0.0
        %464 = vmatprep.subr.mxu0 0.0
        %465 = vmatpush1.msra.mxu0 0.0
        %466 = vmatprep.subr.mxu0 0.0
        %467 = vmatpush1.msra.mxu0 0.0
        %468 = vmatprep.subr.mxu0 0.0
        %469 = vmatpush1.msra.mxu0 0.0
        %470 = vmatprep.subr.mxu0 0.0
        %471 = vmatpush1.msra.mxu0 0.0
        %472 = vmatprep.subr.mxu0 0.0
        %473 = vmatpush1.msra.mxu0 0.0
        %474 = vmatprep.subr.mxu0 0.0
        %475 = vmatpush1.msra.mxu0 0.0
        %476 = vmatprep.subr.mxu0 0.0
        %477 = vmatpush1.msra.mxu0 0.0
        %478 = vmatprep.subr.mxu0 0.0
        %479 = vmatpush1.msra.mxu0 0.0
        %480 = vmatprep.subr.mxu0 0.0
        %481 = vmatpush1.msra.mxu0 0.0
        %482 = vmatprep.subr.mxu0 0.0
        %483 = vmatpush1.msra.mxu0 0.0
        %484 = vmatprep.subr.mxu0 0.0
        %485 = vmatpush1.msra.mxu0 0.0
        %486 = vmatprep.subr.mxu0 0.0
        %487 = vmatpush1.msra.mxu0 0.0
        %488 = vmatprep.subr.mxu0 0.0
        %489 = vmatpush1.msra.mxu0 0.0
        %490 = vmatprep.subr.mxu0 0.0
        %491 = vmatpush1.msra.mxu0 %v461
        %492 = vmatprep.subr.mxu0 0.0
        %493 = vmatpush1.msra.mxu0 %v460
        %494 = vmatprep.subr.mxu0 0.0
        %495 = vmatpush2.msra.mxu0 0.0
        %496 = vmatprep.subr.mxu0 0.0
        %497 = vmatpush2.msra.mxu0 0.0
        %498 = vmatprep.subr.mxu0 0.0
        %499 = vmatpush2.msra.mxu0 0.0
        %500 = vmatprep.subr.mxu0 0.0
        %501 = vmatpush2.msra.mxu0 0.0
        %502 = vmatprep.subr.mxu0 0.0
        %503 = vmatpush2.msra.mxu0 0.0
        %504 = vmatprep.subr.mxu0 0.0
        %505 = vmatpush2.msra.mxu0 0.0
        %506 = vmatprep.subr.mxu0 0.0
        %507 = vmatpush2.msra.mxu0 0.0
        %508 = vmatprep.subr.mxu0 0.0
        %509 = vmatpush2.msra.mxu0 0.0
        %510 = vmatprep.subr.mxu0 0.0
        %511 = vmatpush2.msra.mxu0 0.0
        %512 = vmatprep.subr.mxu0 0.0
        %513 = vmatpush2.msra.mxu0 0.0
        %514 = vmatprep.subr.mxu0 0.0
        %515 = vmatpush2.msra.mxu0 0.0
        %516 = vmatprep.subr.mxu0 0.0
        %517 = vmatpush2.msra.mxu0 0.0
        %518 = vmatprep.subr.mxu0 0.0
        %519 = vmatpush2.msra.mxu0 0.0
        %520 = vmatprep.subr.mxu0 0.0
        %521 = vmatpush2.msra.mxu0 0.0
        %522 = vmatprep.subr.mxu0 0.0
        %523 = vmatpush2.msra.mxu0 0.0
        %524 = vmatprep.subr.mxu0 0.0
        %525 = vmatpush2.msra.mxu0 0.0
        %526 = vmatprep.mubr.f32.mxu0 0.0
        %527 = vmatmul.mubr.f32.gmra.mxu0 %v241
        %v528 = vpop.f32.mrf.mxu0
        %v529 = vadd.f32 %v237, %v528
        %v530 = vpop.f32.mrf.mxu0
        %531 = vdwg.mxu0
        %v532 = vmul.f32 %v310, %v310
        %vm533 = vcmask 1043456
        %v534 = vsel %vm533, %v532, 0.0
        %v535 = vrot.slane %v534, 4
        %v536 = vadd.f32 %v534, %v535
        %v537 = vrot.slane %v536, 2
        %v538 = vadd.f32 %v536, %v537
        %v539 = vrot.slane %v538, 1
        %v540 = vadd.f32 %v538, %v539
        %v541 = vmul.f32 %v383, %v383
        %v542 = vsel %vm533, %v541, 0.0
        %v543 = vrot.slane %v542, 4
        %v544 = vadd.f32 %v542, %v543
        %v545 = vrot.slane %v544, 2
        %v546 = vadd.f32 %v544, %v545
        %v547 = vrot.slane %v546, 1
        %v548 = vadd.f32 %v546, %v547
        %v549 = vadd.f32 %v540, %v548
        %v550 = vmul.f32 %v456, %v456
        %v551 = vsel %vm533, %v550, 0.0
        %v552 = vrot.slane %v551, 4
        %v553 = vadd.f32 %v551, %v552
        %v554 = vrot.slane %v553, 2
        %v555 = vadd.f32 %v553, %v554
        %v556 = vrot.slane %v555, 1
        %v557 = vadd.f32 %v555, %v556
        %v558 = vadd.f32 %v549, %v557
        %v559 = vmul.f32 %v529, %v529
        %v560 = vsel %vm533, %v559, 0.0
        %v561 = vrot.slane %v560, 4
        %v562 = vadd.f32 %v560, %v561
        %v563 = vrot.slane %v562, 2
        %v564 = vadd.f32 %v562, %v563
        %v565 = vrot.slane %v564, 1
        %v566 = vadd.f32 %v564, %v565
        %v567 = vadd.f32 %v558, %v566
        %v568 = vlaneseq
        %v569 = vand.u32 %v568, 127
        %v570 = vlaneseq
        %v571 = vshrl.u32 %v570, 7
        %v572 = vmul.u32 %v571, 64
        %vm573 = vcmp.ge.s32.totalorder %v569, %v572
        %v574 = vadd.s32 %v572, 64
        %vm575 = vcmp.lt.s32.totalorder %v569, %v574
        %vm576 = vmand %vm573, %vm575
        %v577 = vsel %vm576, 1, 0
        %v578 = vcvt.s32.f32 %v577
        %579 = vmatprep.subr.mxu0 0.0
        %580 = vmatpush1.xpose.msra.mxu0 0.0
        %581 = vmatprep.subr.mxu0 0.0
        %582 = vmatpush1.xpose.msra.mxu0 0.0
        %583 = vmatprep.subr.mxu0 0.0
        %584 = vmatpush1.xpose.msra.mxu0 0.0
        %585 = vmatprep.subr.mxu0 0.0
        %586 = vmatpush1.xpose.msra.mxu0 0.0
        %587 = vmatprep.subr.mxu0 0.0
        %588 = vmatpush1.xpose.msra.mxu0 0.0
        %589 = vmatprep.subr.mxu0 0.0
        %590 = vmatpush1.xpose.msra.mxu0 0.0
        %591 = vmatprep.subr.mxu0 0.0
        %592 = vmatpush1.xpose.msra.mxu0 0.0
        %593 = vmatprep.subr.mxu0 0.0
        %594 = vmatpush1.xpose.msra.mxu0 0.0
        %595 = vmatprep.subr.mxu0 0.0
        %596 = vmatpush1.xpose.msra.mxu0 0.0
        %597 = vmatprep.subr.mxu0 0.0
        %598 = vmatpush1.xpose.msra.mxu0 0.0
        %599 = vmatprep.subr.mxu0 0.0
        %600 = vmatpush1.xpose.msra.mxu0 0.0
        %601 = vmatprep.subr.mxu0 0.0
        %602 = vmatpush1.xpose.msra.mxu0 0.0
        %603 = vmatprep.subr.mxu0 0.0
        %604 = vmatpush1.xpose.msra.mxu0 0.0
        %605 = vmatprep.subr.mxu0 0.0
        %606 = vmatpush1.xpose.msra.mxu0 0.0
        %607 = vmatprep.subr.mxu0 0.0
        %608 = vmatpush1.xpose.msra.mxu0 0.0
        %609 = vmatprep.subr.mxu0 0.0
        %610 = vmatpush1.xpose.msra.mxu0 %v578
        %611 = vmatprep.subr.mxu0 0.0
        %612 = vmatpush2.xpose.msra.mxu0 0.0
        %613 = vmatprep.subr.mxu0 0.0
        %614 = vmatpush2.xpose.msra.mxu0 0.0
        %615 = vmatprep.subr.mxu0 0.0
        %616 = vmatpush2.xpose.msra.mxu0 0.0
        %617 = vmatprep.subr.mxu0 0.0
        %618 = vmatpush2.xpose.msra.mxu0 0.0
        %619 = vmatprep.subr.mxu0 0.0
        %620 = vmatpush2.xpose.msra.mxu0 0.0
        %621 = vmatprep.subr.mxu0 0.0
        %622 = vmatpush2.xpose.msra.mxu0 0.0
        %623 = vmatprep.subr.mxu0 0.0
        %624 = vmatpush2.xpose.msra.mxu0 0.0
        %625 = vmatprep.subr.mxu0 0.0
        %626 = vmatpush2.xpose.msra.mxu0 0.0
        %627 = vmatprep.subr.mxu0 0.0
        %628 = vmatpush2.xpose.msra.mxu0 0.0
        %629 = vmatprep.subr.mxu0 0.0
        %630 = vmatpush2.xpose.msra.mxu0 0.0
        %631 = vmatprep.subr.mxu0 0.0
        %632 = vmatpush2.xpose.msra.mxu0 0.0
        %633 = vmatprep.subr.mxu0 0.0
        %634 = vmatpush2.xpose.msra.mxu0 0.0
        %635 = vmatprep.subr.mxu0 0.0
        %636 = vmatpush2.xpose.msra.mxu0 0.0
        %637 = vmatprep.subr.mxu0 0.0
        %638 = vmatpush2.xpose.msra.mxu0 0.0
        %639 = vmatprep.subr.mxu0 0.0
        %640 = vmatpush2.xpose.msra.mxu0 0.0
        %641 = vmatprep.subr.mxu0 0.0
        %642 = vmatpush2.xpose.msra.mxu0 0.0
        %643 = vmatprep.mubr.f32.mxu0 0.0
        %644 = vmatmul.mubr.f32.gmra.mxu0 %v567
        %v645 = vpop.f32.mrf.mxu0
        %v646 = vadd.f32 0.0, %v645
        %v647 = vpop.f32.mrf.mxu0
        %648 = vdwg.mxu0
        %v649 = vmul.f32 %v646, 0.0009765625
        %v650 = vadd.f32 %v649, 1.1920929e-07
        %v651 = vrsqrt.pop %v650
        %vm652 = vcmask 15360
        %v654 = vsel %vm652, %v651, 0
        %vm656 = vcmask 1041408
        %v658 = vsel %vm656, %v578, 0
        %660 = vmatprep.subr.mxu0 0.0
        %661 = vmatpush1.msra.mxu0 0.0
        %662 = vmatprep.subr.mxu0 0.0
        %663 = vmatpush1.msra.mxu0 0.0
        %664 = vmatprep.subr.mxu0 0.0
        %665 = vmatpush1.msra.mxu0 0.0
        %666 = vmatprep.subr.mxu0 0.0
        %667 = vmatpush1.msra.mxu0 0.0
        %668 = vmatprep.subr.mxu0 0.0
        %669 = vmatpush1.msra.mxu0 0.0
        %670 = vmatprep.subr.mxu0 0.0
        %671 = vmatpush1.msra.mxu0 0.0
        %672 = vmatprep.subr.mxu0 0.0
        %673 = vmatpush1.msra.mxu0 0.0
        %674 = vmatprep.subr.mxu0 0.0
        %675 = vmatpush1.msra.mxu0 0.0
        %676 = vmatprep.subr.mxu0 0.0
        %677 = vmatpush1.msra.mxu0 0.0
        %678 = vmatprep.subr.mxu0 0.0
        %679 = vmatpush1.msra.mxu0 0.0
        %680 = vmatprep.subr.mxu0 0.0
        %681 = vmatpush1.msra.mxu0 0.0
        %682 = vmatprep.subr.mxu0 0.0
        %683 = vmatpush1.msra.mxu0 0.0
        %684 = vmatprep.subr.mxu0 0.0
        %685 = vmatpush1.msra.mxu0 0.0
        %686 = vmatprep.subr.mxu0 0.0
        %687 = vmatpush1.msra.mxu0 0.0
        %688 = vmatprep.subr.mxu0 0.0
        %689 = vmatpush1.msra.mxu0 0.0
        %690 = vmatprep.subr.mxu0 0.0
        %691 = vmatpush1.msra.mxu0 %v658
        %692 = vmatprep.subr.mxu0 0.0
        %693 = vmatpush2.msra.mxu0 0.0
        %694 = vmatprep.subr.mxu0 0.0
        %695 = vmatpush2.msra.mxu0 0.0
        %696 = vmatprep.subr.mxu0 0.0
        %697 = vmatpush2.msra.mxu0 0.0
        %698 = vmatprep.subr.mxu0 0.0
        %699 = vmatpush2.msra.mxu0 0.0
        %700 = vmatprep.subr.mxu0 0.0
        %701 = vmatpush2.msra.mxu0 0.0
        %702 = vmatprep.subr.mxu0 0.0
        %703 = vmatpush2.msra.mxu0 0.0
        %704 = vmatprep.subr.mxu0 0.0
        %705 = vmatpush2.msra.mxu0 0.0
        %706 = vmatprep.subr.mxu0 0.0
        %707 = vmatpush2.msra.mxu0 0.0
        %708 = vmatprep.subr.mxu0 0.0
        %709 = vmatpush2.msra.mxu0 0.0
        %710 = vmatprep.subr.mxu0 0.0
        %711 = vmatpush2.msra.mxu0 0.0
        %712 = vmatprep.subr.mxu0 0.0
        %713 = vmatpush2.msra.mxu0 0.0
        %714 = vmatprep.subr.mxu0 0.0
        %715 = vmatpush2.msra.mxu0 0.0
        %716 = vmatprep.subr.mxu0 0.0
        %717 = vmatpush2.msra.mxu0 0.0
        %718 = vmatprep.subr.mxu0 0.0
        %719 = vmatpush2.msra.mxu0 0.0
        %720 = vmatprep.subr.mxu0 0.0
        %721 = vmatpush2.msra.mxu0 0.0
        %722 = vmatprep.subr.mxu0 0.0
        %723 = vmatpush2.msra.mxu0 0.0
        %724 = vmatprep.mubr.f32.mxu0 0.0
        %725 = vmatmul.mubr.f32.gmra.mxu0 %v654
        %v726 = vpop.f32.mrf.mxu0
        %v727 = vadd.f32 0.0, %v726
        %v728 = vpop.f32.mrf.mxu0
        %729 = vdwg.mxu0
        %v730 = vlaneseq
        %v731 = vshrl.u32 %v730, 7
        %v732 = vsub.s32 0, %v731
        %v733 = vrot.slane %v727, %v732
        %v734 = vmul.f32 %v310, %v733
        %v735 = vld [vmem:[#allocation5] sm:$0xf]
        %v736 = vmul.f32 %v734, %v735
        %v737 = vmul.f32 %v383, %v733
        %s738 = scalar_lea.vmem [#allocation5], 4
        %v739 = vld [vmem:[%s738] sm:$0xf]
        %v740 = vmul.f32 %v737, %v739
        %v741 = vmul.f32 %v456, %v733
        %s742 = scalar_lea.vmem [#allocation5], 8
        %v743 = vld [vmem:[%s742] sm:$0xf]
        %v744 = vmul.f32 %v741, %v743
        %v745 = vmul.f32 %v529, %v733
        %s746 = scalar_lea.vmem [#allocation5], 12
        %v747 = vld [vmem:[%s746] sm:$0xf]
        %v748 = vmul.f32 %v745, %v747
        %v749 = vadd.f32 %v736, %v740
        %v750 = vsub.f32 %v736, %v740
        %v751 = vadd.f32 %v744, %v748
        %v752 = vsub.f32 %v744, %v748
        %v753 = vadd.f32 %v749, %v751
        %754 = vst [vmem:[%s229] sm:$0xf] %v753
        %v755 = vadd.f32 %v750, %v752
        %s756 = scalar_lea.vmem %s229, 4 [#allocation7]
        %757 = vst [vmem:[%s756] sm:$0xf] %v755
        %v758 = vsub.f32 %v749, %v751
        %s759 = scalar_lea.vmem %s229, 8 [#allocation7]
        %760 = vst [vmem:[%s759] sm:$0xf] %v758
        %v761 = vsub.f32 %v750, %v752
        %s762 = scalar_lea.vmem %s229, 12 [#allocation7]
        %763 = vst [vmem:[%s762] sm:$0xf] %v761
        %s764 = sand.u32 %s119, 1
        %s765 = scalar_lea.sflag [#allocation4], %s764
        %s766 = sand.u32 %s119, 1
        %s767 = smul.addr %s766, 16
        %s768 = scalar_lea.vmem [#allocation7], %s767
        // Predicated region
        $region45: #{tpu_custom_call.1} parent=35 // pred_check
          %p769 = pneg %p129
        $region46: #{tpu_custom_call.1} parent=35 // pred_check_branch
          %771 = sbr.rel (%p769) target = $region48
        $region47: #{tpu_custom_call.1} parent=35 // pred_region
          %s773 = ssub.s32 256, 256
          %774 = vsyncadd %s765, %s773
          %s775 = smul.addr %s22, 64
          %s776 = scalar_lea.hbm %s4, %s775
          %s777 = sshll.u32 %s768, 4
          %s778 = int_to_ptr.vmem [resolvable:$true] %s777
          %783 = dma.vmem_to_hbm [thread:$0]  %s778, 256, %s776, %s765, 64, 128, 4
        $region48: #{tpu_custom_call.1} parent=35 // pred_fallthru
          _
      $region36: #{tpu_custom_call.1} parent=5 // pred_fallthru
        _
      %p784 = scmp.le.s32.totalorder 2, %s17
      // Predicated region
      $region49: #{tpu_custom_call.1} parent=5 // pred_check
        %p785 = pneg %p784
      $region50: #{tpu_custom_call.1} parent=5 // pred_check_branch
        %787 = sbr.rel (%p785) target = $region52
      $region51: #{tpu_custom_call.1} parent=5 // pred_region
        %s788 = ssub.s32 %s17, 2
        // Predicated region
        $region53: #{tpu_custom_call.1} parent=51 // pred_check
          %p789 = pneg %p135
        $region54: #{tpu_custom_call.1} parent=51 // pred_check_branch
          %791 = sbr.rel (%p789) target = $region56
        $region55: #{tpu_custom_call.1} parent=51 // pred_region
          %s792 = sand.u32 %s120, 1
          %s793 = scalar_lea.sflag [#allocation4], %s792
          %s794 = sand.u32 %s120, 1
          %s795 = smul.addr %s794, 16
          %s796 = scalar_lea.vmem [#allocation7], %s795
          %797 = dma.done %s793, 256
        $region56: #{tpu_custom_call.1} parent=51 // pred_fallthru
          _
      $region52: #{tpu_custom_call.1} parent=5 // pred_fallthru
        _
    $region6: #{tpu_custom_call.1} parent=1 // loop_footer
      %s21 = sadd.s32 1, %s17
    $region7: #{tpu_custom_call.1} parent=1 // loop_footer_branch
      %16 = sbr.rel target = $region3
    $region8: #{tpu_custom_call.1} parent=1 // loop_exit
      _
    %798 = vsyncpa [#allocation3], 1
    %s799 = scalar_lea.sflag [#allocation3], 1
    %800 = vsyncpa %s799, 1
    %801 = vsyncpa [#allocation6], 1
    %802 = vsyncpa [#allocation4], 1
    %s803 = scalar_lea.sflag [#allocation4], 1
    %804 = vsyncpa %s803, 1

// kernel: tpu_custom_call.1
$region0: #{tpu_custom_call.1}
  #allocation0 [shape = 'u32[]', space=smem, size = 0x4, offset = 0x4, fixed_abs, tag = 'smem constant byte address 0x4 - core index']
  #allocation1 [shape = 'u32[144,128]{1,0:T(1,128)}', space=vmem, size = 0x12000, scoped, tag = 'internal scratch']
  %s0 = inlined_call_operand.hbm [shape: f32[4,16,256], index: 0, kind: input, shape index: {}]
  %s1 = inlined_call_operand.vmem [shape: f32[4,16], index: 1, kind: input, shape index: {}]
  %s2 = inlined_call_operand.vmem [shape: f32[4,1], index: 2, kind: input, shape index: {}]
  %s3 = inlined_call_operand.hbm [shape: f32[4,4,128], index: 3, kind: input, shape index: {}]
  %s4 = inlined_call_operand.hbm [shape: f32[4,4,256], index: 4, kind: output, shape index: {}]
  %s5 = sld [smem:[#allocation0]]
  $region57: #{tpu_custom_call.1} parent=0
    _
  %s7 = ssub.s32 1, %s5
  %s8 = scalar_select 0, %s7, %s5
  $region1: #{tpu_custom_call.1} parent=0
    #allocation2 [shape = 'u8[65536]{0}', space=vmem, size = 0x10000, scoped, tag = 'input window, operand 0']
    #allocation3 [shape = 's32[2]{0}', space=sflag, size = 0x8, scoped, tag = 'scoped memory for tpu_custom_call.1']
    #allocation4 [shape = 's32[2]{0}', space=sflag, size = 0x8, scoped, tag = 'scoped memory for tpu_custom_call.1']
    #allocation5 [shape = 'u8[8192]{0}', space=vmem, size = 0x2000, scoped, tag = 'input window, operand 3, single buffered']
    #allocation6 [shape = 's32[1]{0}', space=sflag, size = 0x4, scoped, tag = 'scoped memory for tpu_custom_call.1']
    #allocation7 [shape = 'u8[16384]{0}', space=vmem, size = 0x4000, scoped, tag = 'output window, operand 0']
    %9 = vsyncpa [#allocation3], 0
    %s10 = scalar_lea.sflag [#allocation3], 1
    %11 = vsyncpa %s10, 0
    %12 = vsyncpa [#allocation6], 0
    %13 = vsyncpa [#allocation4], 0
    %s14 = scalar_lea.sflag [#allocation4], 1
    %15 = vsyncpa %s14, 0
    loop: start=0, step=1, limit=4
    $region2: #{tpu_custom_call.1} parent=1 // loop_pre_header
      _
    $region3: #{tpu_custom_call.1} parent=1 // loop_header
      %s17 = sphi 0, %s21
      %p18 = scmp.ge.s32.totalorder %s17, 4
      %s27 = sphi 0, %s29
      %s30 = sphi 0, %s27
      %s31 = sphi 0, %s30
      %s47 = sphi 0, %s31
      %s51 = sphi 0, %s51
      %s53 = sphi 0, %s51
      %s54 = sphi 0, %s53
      %s68 = sphi 0, %s54
      %s72 = sphi 0, %s72
      %s74 = sphi 0, %s72
      %s75 = sphi 0, %s74
      %s89 = sphi 0, %s75
      %s93 = sphi 0, %s93
      %s95 = sphi 0, %s93
      %s96 = sphi 0, %s95
      %s110 = sphi 0, %s96
      %s116 = sphi 0, %s118
      %s119 = sphi 0, %s116
      %s120 = sphi 0, %s119
      %s136 = sphi 0, %s120
    $region4: #{tpu_custom_call.1} parent=1 // loop_header_branch
      %20 = sbr.rel (%p18) target = $region8
    $region5: #{tpu_custom_call.1} parent=1 // loop_body
      %s22 = ssub.s32 %s17, 1
      %s23 = ssub.s32 %s17, 2
      %s24 = sadd.s32 %s17, 1
      %s25 = ssub.s32 %s17, %s24
      %p26 = scmp.eq.s32.totalorder %s25, 0
      %s28 = sadd.s32 %s27, 1
      %s29 = scalar_select %p26, %s27, %s28
      %p32 = pneg %p26
      %p33 = scmp.eq.s32.totalorder %s17, 1
      %p34 = por %p32, %p33
      %p35 = scmp.ne.s32.totalorder %s27, %s30
      %p36 = scmp.eq.s32.totalorder %s17, 0
      %p37 = por %p35, %p36
      %p38 = scmp.ne.s32.totalorder %s27, %s30
      %p39 = scmp.eq.s32.totalorder %s22, 1
      %p40 = por %p38, %p39
      %p41 = scmp.ne.s32.totalorder %s30, %s31
      %p42 = scmp.eq.s32.totalorder %s22, 0
      %p43 = por %p41, %p42
      %p44 = scmp.ne.s32.totalorder %s30, %s31
      %p45 = scmp.eq.s32.totalorder %s23, 1
      %p46 = por %p44, %p45
      %p48 = scmp.ne.s32.totalorder %s31, %s47
      %p49 = scmp.eq.s32.totalorder %s23, 0
      %p50 = por %p48, %p49
      %s52 = sadd.s32 %s51, 1
      %p55 = scmp.eq.s32.totalorder %s17, 1
      %p56 = scmp.ne.s32.totalorder %s51, %s53
      %p57 = scmp.eq.s32.totalorder %s17, 0
      %p58 = por %p56, %p57
      %p59 = scmp.ne.s32.totalorder %s51, %s53
      %p60 = scmp.eq.s32.totalorder %s22, 1
      %p61 = por %p59, %p60
      %p62 = scmp.ne.s32.totalorder %s53, %s54
      %p63 = scmp.eq.s32.totalorder %s22, 0
      %p64 = por %p62, %p63
      %p65 = scmp.ne.s32.totalorder %s53, %s54
      %p66 = scmp.eq.s32.totalorder %s23, 1
      %p67 = por %p65, %p66
      %p69 = scmp.ne.s32.totalorder %s54, %s68
      %p70 = scmp.eq.s32.totalorder %s23, 0
      %p71 = por %p69, %p70
      %s73 = sadd.s32 %s72, 1
      %p76 = scmp.eq.s32.totalorder %s17, 1
      %p77 = scmp.ne.s32.totalorder %s72, %s74
      %p78 = scmp.eq.s32.totalorder %s17, 0
      %p79 = por %p77, %p78
      %p80 = scmp.ne.s32.totalorder %s72, %s74
      %p81 = scmp.eq.s32.totalorder %s22, 1
      %p82 = por %p80, %p81
      %p83 = scmp.ne.s32.totalorder %s74, %s75
      %p84 = scmp.eq.s32.totalorder %s22, 0
      %p85 = por %p83, %p84
      %p86 = scmp.ne.s32.totalorder %s74, %s75
      %p87 = scmp.eq.s32.totalorder %s23, 1
      %p88 = por %p86, %p87
      %p90 = scmp.ne.s32.totalorder %s75, %s89
      %p91 = scmp.eq.s32.totalorder %s23, 0
      %p92 = por %p90, %p91
      %s94 = sadd.s32 %s93, 1
      %p97 = scmp.eq.s32.totalorder %s17, 1
      %p98 = scmp.ne.s32.totalorder %s93, %s95
      %p99 = scmp.eq.s32.totalorder %s17, 0
      %p100 = por %p98, %p99
      %p101 = scmp.ne.s32.totalorder %s93, %s95
      %p102 = scmp.eq.s32.totalorder %s22, 1
      %p103 = por %p101, %p102
      %p104 = scmp.ne.s32.totalorder %s95, %s96
      %p105 = scmp.eq.s32.totalorder %s22, 0
      %p106 = por %p104, %p105
      %p107 = scmp.ne.s32.totalorder %s95, %s96
      %p108 = scmp.eq.s32.totalorder %s23, 1
      %p109 = por %p107, %p108
      %p111 = scmp.ne.s32.totalorder %s96, %s110
      %p112 = scmp.eq.s32.totalorder %s23, 0
      %p113 = por %p111, %p112
      %s114 = ssub.s32 %s17, %s24
      %p115 = scmp.eq.s32.totalorder %s114, 0
      %s117 = sadd.s32 %s116, 1
      %s118 = scalar_select %p115, %s116, %s117
      %p121 = pneg %p115
      %p122 = scmp.eq.s32.totalorder %s17, 1
      %p123 = por %p121, %p122
      %p124 = scmp.ne.s32.totalorder %s116, %s119
      %p125 = scmp.eq.s32.totalorder %s17, 0
      %p126 = por %p124, %p125
      %p127 = scmp.ne.s32.totalorder %s116, %s119
      %p128 = scmp.eq.s32.totalorder %s22, 1
      %p129 = por %p127, %p128
      %p130 = scmp.ne.s32.totalorder %s119, %s120
      %p131 = scmp.eq.s32.totalorder %s22, 0
      %p132 = por %p130, %p131
      %p133 = scmp.ne.s32.totalorder %s119, %s120
      %p134 = scmp.eq.s32.totalorder %s23, 1
      %p135 = por %p133, %p134
      %p137 = scmp.ne.s32.totalorder %s120, %s136
      %p138 = scmp.eq.s32.totalorder %s23, 0
      %p139 = por %p137, %p138
      %p140 = scmp.le.s32.totalorder 1, %s17
      %p141 = scmp.lt.s32.totalorder %s17, 3
      %p142 = pnand %p140, %p141
      %p143 = pneg %p142
      // Predicated region
      $region9: #{tpu_custom_call.1} parent=5 // pred_check
        _
      $region10: #{tpu_custom_call.1} parent=5 // pred_check_branch
        %145 = sbr.rel (%p142) target = $region12
      $region11: #{tpu_custom_call.1} parent=5 // pred_region
        %s146 = ssub.s32 %s17, 1
        // Predicated region
        $region13: #{tpu_custom_call.1} parent=11 // pred_check
          %p147 = pneg %p64
        $region14: #{tpu_custom_call.1} parent=11 // pred_check_branch
          %149 = sbr.rel (%p147) target = $region16
        $region15: #{tpu_custom_call.1} parent=11 // pred_region
          _
        $region16: #{tpu_custom_call.1} parent=11 // pred_fallthru
          _
        // Predicated region
        $region17: #{tpu_custom_call.1} parent=11 // pred_check
          %p150 = pneg %p85
        $region18: #{tpu_custom_call.1} parent=11 // pred_check_branch
          %152 = sbr.rel (%p150) target = $region20
        $region19: #{tpu_custom_call.1} parent=11 // pred_region
          _
        $region20: #{tpu_custom_call.1} parent=11 // pred_fallthru
          _
        // Predicated region
        $region21: #{tpu_custom_call.1} parent=11 // pred_check
          %p153 = pneg %p106
        $region22: #{tpu_custom_call.1} parent=11 // pred_check_branch
          %155 = sbr.rel (%p153) target = $region24
        $region23: #{tpu_custom_call.1} parent=11 // pred_region
          %s157 = ssub.s32 256, 256
          %158 = vsyncadd [#allocation6], %s157
          %s159 = sshll.u32 [#allocation5], 4
          %s160 = int_to_ptr.vmem [resolvable:$true] %s159
          %165 = dma.hbm_to_vmem [thread:$0]  %s3, 256, %s160, [#allocation6], 64, 64, 4
        $region24: #{tpu_custom_call.1} parent=11 // pred_fallthru
          _
      $region12: #{tpu_custom_call.1} parent=5 // pred_fallthru
        _
      %p166 = scmp.lt.s32.totalorder %s17, 2
      // Predicated region
      $region25: #{tpu_custom_call.1} parent=5 // pred_check
        %p167 = pneg %p166
      $region26: #{tpu_custom_call.1} parent=5 // pred_check_branch
        %169 = sbr.rel (%p167) target = $region28
      $region27: #{tpu_custom_call.1} parent=5 // pred_region
        // Predicated region
        $region29: #{tpu_custom_call.1} parent=27 // pred_check
          %p170 = pneg %p37
        $region30: #{tpu_custom_call.1} parent=27 // pred_check_branch
          %172 = sbr.rel (%p170) target = $region32
        $region31: #{tpu_custom_call.1} parent=27 // pred_region
          %s173 = sand.u32 %s27, 1
          %s174 = scalar_lea.sflag [#allocation3], %s173
          %s175 = sand.u32 %s27, 1
          %s176 = smul.addr %s175, 64
          %s177 = scalar_lea.vmem [#allocation2], %s176
          %s179 = ssub.s32 1024, 1024
          %180 = vsyncadd %s174, %s179
          %s181 = smul.addr %s17, 128
          %s182 = scalar_lea.hbm %s0, %s181
          %s183 = sshll.u32 %s177, 4
          %s184 = int_to_ptr.vmem [resolvable:$true] %s183
          %189 = dma.hbm_to_vmem [thread:$0]  %s182, 1024, %s184, %s174, 256, 128, 8
        $region32: #{tpu_custom_call.1} parent=27 // pred_fallthru
          _
      $region28: #{tpu_custom_call.1} parent=5 // pred_fallthru
        _
      %p190 = scmp.le.s32.totalorder 1, %s17
      %p191 = scmp.lt.s32.totalorder %s17, 3
      %p192 = pnand %p190, %p191
      %p193 = pneg %p192
      // Predicated region
      $region33: #{tpu_custom_call.1} parent=5 // pred_check
        _
      $region34: #{tpu_custom_call.1} parent=5 // pred_check_branch
        %195 = sbr.rel (%p192) target = $region36
      $region35: #{tpu_custom_call.1} parent=5 // pred_region
        %s196 = ssub.s32 %s17, 1
        %s197 = sand.u32 %s30, 1
        %s198 = scalar_lea.sflag [#allocation3], %s197
        %s199 = sand.u32 %s30, 1
        %s200 = smul.addr %s199, 64
        %s201 = scalar_lea.vmem [#allocation2], %s200
        // Predicated region
        $region37: #{tpu_custom_call.1} parent=35 // pred_check
          %p202 = pneg %p43
        $region38: #{tpu_custom_call.1} parent=35 // pred_check_branch
          %204 = sbr.rel (%p202) target = $region40
        $region39: #{tpu_custom_call.1} parent=35 // pred_region
          %205 = dma.done %s198, 1024
        $region40: #{tpu_custom_call.1} parent=35 // pred_fallthru
          _
        // Predicated region
        $region41: #{tpu_custom_call.1} parent=35 // pred_check
          %p206 = pneg %p106
        $region42: #{tpu_custom_call.1} parent=35 // pred_check_branch
          %208 = sbr.rel (%p206) target = $region44
        $region43: #{tpu_custom_call.1} parent=35 // pred_region
          %209 = dma.done [#allocation6], 256
        $region44: #{tpu_custom_call.1} parent=35 // pred_fallthru
          _
        %s210 = sand.u32 %s30, 1
        %s211 = scalar_lea.sflag [#allocation3], %s210
        %s212 = sand.u32 %s30, 1
        %s213 = smul.addr %s212, 64
        %s214 = scalar_lea.vmem [#allocation2], %s213
        %p215 = pneg %p43
        %p216 = pneg %p40
        %p217 = pneg %p64
        %p218 = pneg %p61
        %p219 = pneg %p85
        %p220 = pneg %p82
        %p221 = pneg %p106
        %p222 = pneg %p103
        %p223 = pneg %p132
        %p224 = pneg %p129
        %s225 = sand.u32 %s119, 1
        %s226 = scalar_lea.sflag [#allocation4], %s225
        %s227 = sand.u32 %s119, 1
        %s228 = smul.addr %s227, 16
        %s229 = scalar_lea.vmem [#allocation7], %s228
        %v230 = vld [vmem:[%s1] sm:$0xf]
        %v231 = vld [vmem:[%s2] sm:$0xf]
        %v232 = vld [vmem:[%s201] sm:$0xff]
        %v233 = vld [vmem:[%s201 + $0x8] sm:$0xff]
        %235 = vset.pattern.permute.xlu0 0
        %236 = vperm.xlu0 %235, %v231
        %v237 = vpop.permute.xlu0 %236
        %vm239 = vcmask 130048
        %v241 = vsel %vm239, %v230, 0
        %243 = vmatprep.subr.mxu0 0.0
        %244 = vmatpush1.msra.mxu0 0.0
        %245 = vmatprep.subr.mxu0 0.0
        %246 = vmatpush1.msra.mxu0 0.0
        %247 = vmatprep.subr.mxu0 0.0
        %248 = vmatpush1.msra.mxu0 0.0
        %249 = vmatprep.subr.mxu0 0.0
        %250 = vmatpush1.msra.mxu0 0.0
        %251 = vmatprep.subr.mxu0 0.0
        %252 = vmatpush1.msra.mxu0 0.0
        %253 = vmatprep.subr.mxu0 0.0
        %254 = vmatpush1.msra.mxu0 0.0
        %255 = vmatprep.subr.mxu0 0.0
        %256 = vmatpush1.msra.mxu0 0.0
        %257 = vmatprep.subr.mxu0 0.0
        %258 = vmatpush1.msra.mxu0 0.0
        %259 = vmatprep.subr.mxu0 0.0
        %260 = vmatpush1.msra.mxu0 0.0
        %261 = vmatprep.subr.mxu0 0.0
        %262 = vmatpush1.msra.mxu0 0.0
        %263 = vmatprep.subr.mxu0 0.0
        %264 = vmatpush1.msra.mxu0 0.0
        %265 = vmatprep.subr.mxu0 0.0
        %266 = vmatpush1.msra.mxu0 0.0
        %267 = vmatprep.subr.mxu0 0.0
        %268 = vmatpush1.msra.mxu0 0.0
        %269 = vmatprep.subr.mxu0 0.0
        %270 = vmatpush1.msra.mxu0 0.0
        %271 = vmatprep.subr.mxu0 0.0
        %272 = vmatpush1.msra.mxu0 %v233
        %273 = vmatprep.subr.mxu0 0.0
        %274 = vmatpush1.msra.mxu0 %v232
        %275 = vmatprep.subr.mxu0 0.0
        %276 = vmatpush2.msra.mxu0 0.0
        %277 = vmatprep.subr.mxu0 0.0
        %278 = vmatpush2.msra.mxu0 0.0
        %279 = vmatprep.subr.mxu0 0.0
        %280 = vmatpush2.msra.mxu0 0.0
        %281 = vmatprep.subr.mxu0 0.0
        %282 = vmatpush2.msra.mxu0 0.0
        %283 = vmatprep.subr.mxu0 0.0
        %284 = vmatpush2.msra.mxu0 0.0
        %285 = vmatprep.subr.mxu0 0.0
        %286 = vmatpush2.msra.mxu0 0.0
        %287 = vmatprep.subr.mxu0 0.0
        %288 = vmatpush2.msra.mxu0 0.0
        %289 = vmatprep.subr.mxu0 0.0
        %290 = vmatpush2.msra.mxu0 0.0
        %291 = vmatprep.subr.mxu0 0.0
        %292 = vmatpush2.msra.mxu0 0.0
        %293 = vmatprep.subr.mxu0 0.0
        %294 = vmatpush2.msra.mxu0 0.0
        %295 = vmatprep.subr.mxu0 0.0
        %296 = vmatpush2.msra.mxu0 0.0
        %297 = vmatprep.subr.mxu0 0.0
        %298 = vmatpush2.msra.mxu0 0.0
        %299 = vmatprep.subr.mxu0 0.0
        %300 = vmatpush2.msra.mxu0 0.0
        %301 = vmatprep.subr.mxu0 0.0
        %302 = vmatpush2.msra.mxu0 0.0
        %303 = vmatprep.subr.mxu0 0.0
        %304 = vmatpush2.msra.mxu0 0.0
        %305 = vmatprep.subr.mxu0 0.0
        %306 = vmatpush2.msra.mxu0 0.0
        %307 = vmatprep.mubr.f32.mxu0 0.0
        %308 = vmatmul.mubr.f32.gmra.mxu0 %v241
        %v309 = vpop.f32.mrf.mxu0
        %v310 = vadd.f32 %v237, %v309
        %v311 = vpop.f32.mrf.mxu0
        %312 = vdwg.mxu0
        %s313 = scalar_lea.vmem %s201, 16 [#allocation2]
        %v314 = vld [vmem:[%s313] sm:$0xff]
        %v315 = vld [vmem:[%s313 + $0x8] sm:$0xff]
        %316 = vmatprep.subr.mxu0 0.0
        %317 = vmatpush1.msra.mxu0 0.0
        %318 = vmatprep.subr.mxu0 0.0
        %319 = vmatpush1.msra.mxu0 0.0
        %320 = vmatprep.subr.mxu0 0.0
        %321 = vmatpush1.msra.mxu0 0.0
        %322 = vmatprep.subr.mxu0 0.0
        %323 = vmatpush1.msra.mxu0 0.0
        %324 = vmatprep.subr.mxu0 0.0
        %325 = vmatpush1.msra.mxu0 0.0
        %326 = vmatprep.subr.mxu0 0.0
        %327 = vmatpush1.msra.mxu0 0.0
        %328 = vmatprep.subr.mxu0 0.0
        %329 = vmatpush1.msra.mxu0 0.0
        %330 = vmatprep.subr.mxu0 0.0
        %331 = vmatpush1.msra.mxu0 0.0
        %332 = vmatprep.subr.mxu0 0.0
        %333 = vmatpush1.msra.mxu0 0.0
        %334 = vmatprep.subr.mxu0 0.0
        %335 = vmatpush1.msra.mxu0 0.0
        %336 = vmatprep.subr.mxu0 0.0
        %337 = vmatpush1.msra.mxu0 0.0
        %338 = vmatprep.subr.mxu0 0.0
        %339 = vmatpush1.msra.mxu0 0.0
        %340 = vmatprep.subr.mxu0 0.0
        %341 = vmatpush1.msra.mxu0 0.0
        %342 = vmatprep.subr.mxu0 0.0
        %343 = vmatpush1.msra.mxu0 0.0
        %344 = vmatprep.subr.mxu0 0.0
        %345 = vmatpush1.msra.mxu0 %v315
        %346 = vmatprep.subr.mxu0 0.0
        %347 = vmatpush1.msra.mxu0 %v314
        %348 = vmatprep.subr.mxu0 0.0
        %349 = vmatpush2.msra.mxu0 0.0
        %350 = vmatprep.subr.mxu0 0.0
        %351 = vmatpush2.msra.mxu0 0.0
        %352 = vmatprep.subr.mxu0 0.0
        %353 = vmatpush2.msra.mxu0 0.0
        %354 = vmatprep.subr.mxu0 0.0
        %355 = vmatpush2.msra.mxu0 0.0
        %356 = vmatprep.subr.mxu0 0.0
        %357 = vmatpush2.msra.mxu0 0.0
        %358 = vmatprep.subr.mxu0 0.0
        %359 = vmatpush2.msra.mxu0 0.0
        %360 = vmatprep.subr.mxu0 0.0
        %361 = vmatpush2.msra.mxu0 0.0
        %362 = vmatprep.subr.mxu0 0.0
        %363 = vmatpush2.msra.mxu0 0.0
        %364 = vmatprep.subr.mxu0 0.0
        %365 = vmatpush2.msra.mxu0 0.0
        %366 = vmatprep.subr.mxu0 0.0
        %367 = vmatpush2.msra.mxu0 0.0
        %368 = vmatprep.subr.mxu0 0.0
        %369 = vmatpush2.msra.mxu0 0.0
        %370 = vmatprep.subr.mxu0 0.0
        %371 = vmatpush2.msra.mxu0 0.0
        %372 = vmatprep.subr.mxu0 0.0
        %373 = vmatpush2.msra.mxu0 0.0
        %374 = vmatprep.subr.mxu0 0.0
        %375 = vmatpush2.msra.mxu0 0.0
        %376 = vmatprep.subr.mxu0 0.0
        %377 = vmatpush2.msra.mxu0 0.0
        %378 = vmatprep.subr.mxu0 0.0
        %379 = vmatpush2.msra.mxu0 0.0
        %380 = vmatprep.mubr.f32.mxu0 0.0
        %381 = vmatmul.mubr.f32.gmra.mxu0 %v241
        %v382 = vpop.f32.mrf.mxu0
        %v383 = vadd.f32 %v237, %v382
        %v384 = vpop.f32.mrf.mxu0
        %385 = vdwg.mxu0
        %s386 = scalar_lea.vmem %s201, 32 [#allocation2]
        %v387 = vld [vmem:[%s386] sm:$0xff]
        %v388 = vld [vmem:[%s386 + $0x8] sm:$0xff]
        %389 = vmatprep.subr.mxu0 0.0
        %390 = vmatpush1.msra.mxu0 0.0
        %391 = vmatprep.subr.mxu0 0.0
        %392 = vmatpush1.msra.mxu0 0.0
        %393 = vmatprep.subr.mxu0 0.0
        %394 = vmatpush1.msra.mxu0 0.0
        %395 = vmatprep.subr.mxu0 0.0
        %396 = vmatpush1.msra.mxu0 0.0
        %397 = vmatprep.subr.mxu0 0.0
        %398 = vmatpush1.msra.mxu0 0.0
        %399 = vmatprep.subr.mxu0 0.0
        %400 = vmatpush1.msra.mxu0 0.0
        %401 = vmatprep.subr.mxu0 0.0
        %402 = vmatpush1.msra.mxu0 0.0
        %403 = vmatprep.subr.mxu0 0.0
        %404 = vmatpush1.msra.mxu0 0.0
        %405 = vmatprep.subr.mxu0 0.0
        %406 = vmatpush1.msra.mxu0 0.0
        %407 = vmatprep.subr.mxu0 0.0
        %408 = vmatpush1.msra.mxu0 0.0
        %409 = vmatprep.subr.mxu0 0.0
        %410 = vmatpush1.msra.mxu0 0.0
        %411 = vmatprep.subr.mxu0 0.0
        %412 = vmatpush1.msra.mxu0 0.0
        %413 = vmatprep.subr.mxu0 0.0
        %414 = vmatpush1.msra.mxu0 0.0
        %415 = vmatprep.subr.mxu0 0.0
        %416 = vmatpush1.msra.mxu0 0.0
        %417 = vmatprep.subr.mxu0 0.0
        %418 = vmatpush1.msra.mxu0 %v388
        %419 = vmatprep.subr.mxu0 0.0
        %420 = vmatpush1.msra.mxu0 %v387
        %421 = vmatprep.subr.mxu0 0.0
        %422 = vmatpush2.msra.mxu0 0.0
        %423 = vmatprep.subr.mxu0 0.0
        %424 = vmatpush2.msra.mxu0 0.0
        %425 = vmatprep.subr.mxu0 0.0
        %426 = vmatpush2.msra.mxu0 0.0
        %427 = vmatprep.subr.mxu0 0.0
        %428 = vmatpush2.msra.mxu0 0.0
        %429 = vmatprep.subr.mxu0 0.0
        %430 = vmatpush2.msra.mxu0 0.0
        %431 = vmatprep.subr.mxu0 0.0
        %432 = vmatpush2.msra.mxu0 0.0
        %433 = vmatprep.subr.mxu0 0.0
        %434 = vmatpush2.msra.mxu0 0.0
        %435 = vmatprep.subr.mxu0 0.0
        %436 = vmatpush2.msra.mxu0 0.0
        %437 = vmatprep.subr.mxu0 0.0
        %438 = vmatpush2.msra.mxu0 0.0
        %439 = vmatprep.subr.mxu0 0.0
        %440 = vmatpush2.msra.mxu0 0.0
        %441 = vmatprep.subr.mxu0 0.0
        %442 = vmatpush2.msra.mxu0 0.0
        %443 = vmatprep.subr.mxu0 0.0
        %444 = vmatpush2.msra.mxu0 0.0
        %445 = vmatprep.subr.mxu0 0.0
        %446 = vmatpush2.msra.mxu0 0.0
        %447 = vmatprep.subr.mxu0 0.0
        %448 = vmatpush2.msra.mxu0 0.0
        %449 = vmatprep.subr.mxu0 0.0
        %450 = vmatpush2.msra.mxu0 0.0
        %451 = vmatprep.subr.mxu0 0.0
        %452 = vmatpush2.msra.mxu0 0.0
        %453 = vmatprep.mubr.f32.mxu0 0.0
        %454 = vmatmul.mubr.f32.gmra.mxu0 %v241
        %v455 = vpop.f32.mrf.mxu0
        %v456 = vadd.f32 %v237, %v455
        %v457 = vpop.f32.mrf.mxu0
        %458 = vdwg.mxu0
        %s459 = scalar_lea.vmem %s201, 48 [#allocation2]
        %v460 = vld [vmem:[%s459] sm:$0xff]
        %v461 = vld [vmem:[%s459 + $0x8] sm:$0xff]
        %462 = vmatprep.subr.mxu0 0.0
        %463 = vmatpush1.msra.mxu0 0.0
        %464 = vmatprep.subr.mxu0 0.0
        %465 = vmatpush1.msra.mxu0 0.0
        %466 = vmatprep.subr.mxu0 0.0
        %467 = vmatpush1.msra.mxu0 0.0
        %468 = vmatprep.subr.mxu0 0.0
        %469 = vmatpush1.msra.mxu0 0.0
        %470 = vmatprep.subr.mxu0 0.0
        %471 = vmatpush1.msra.mxu0 0.0
        %472 = vmatprep.subr.mxu0 0.0
        %473 = vmatpush1.msra.mxu0 0.0
        %474 = vmatprep.subr.mxu0 0.0
        %475 = vmatpush1.msra.mxu0 0.0
        %476 = vmatprep.subr.mxu0 0.0
        %477 = vmatpush1.msra.mxu0 0.0
        %478 = vmatprep.subr.mxu0 0.0
        %479 = vmatpush1.msra.mxu0 0.0
        %480 = vmatprep.subr.mxu0 0.0
        %481 = vmatpush1.msra.mxu0 0.0
        %482 = vmatprep.subr.mxu0 0.0
        %483 = vmatpush1.msra.mxu0 0.0
        %484 = vmatprep.subr.mxu0 0.0
        %485 = vmatpush1.msra.mxu0 0.0
        %486 = vmatprep.subr.mxu0 0.0
        %487 = vmatpush1.msra.mxu0 0.0
        %488 = vmatprep.subr.mxu0 0.0
        %489 = vmatpush1.msra.mxu0 0.0
        %490 = vmatprep.subr.mxu0 0.0
        %491 = vmatpush1.msra.mxu0 %v461
        %492 = vmatprep.subr.mxu0 0.0
        %493 = vmatpush1.msra.mxu0 %v460
        %494 = vmatprep.subr.mxu0 0.0
        %495 = vmatpush2.msra.mxu0 0.0
        %496 = vmatprep.subr.mxu0 0.0
        %497 = vmatpush2.msra.mxu0 0.0
        %498 = vmatprep.subr.mxu0 0.0
        %499 = vmatpush2.msra.mxu0 0.0
        %500 = vmatprep.subr.mxu0 0.0
        %501 = vmatpush2.msra.mxu0 0.0
        %502 = vmatprep.subr.mxu0 0.0
        %503 = vmatpush2.msra.mxu0 0.0
        %504 = vmatprep.subr.mxu0 0.0
        %505 = vmatpush2.msra.mxu0 0.0
        %506 = vmatprep.subr.mxu0 0.0
        %507 = vmatpush2.msra.mxu0 0.0
        %508 = vmatprep.subr.mxu0 0.0
        %509 = vmatpush2.msra.mxu0 0.0
        %510 = vmatprep.subr.mxu0 0.0
        %511 = vmatpush2.msra.mxu0 0.0
        %512 = vmatprep.subr.mxu0 0.0
        %513 = vmatpush2.msra.mxu0 0.0
        %514 = vmatprep.subr.mxu0 0.0
        %515 = vmatpush2.msra.mxu0 0.0
        %516 = vmatprep.subr.mxu0 0.0
        %517 = vmatpush2.msra.mxu0 0.0
        %518 = vmatprep.subr.mxu0 0.0
        %519 = vmatpush2.msra.mxu0 0.0
        %520 = vmatprep.subr.mxu0 0.0
        %521 = vmatpush2.msra.mxu0 0.0
        %522 = vmatprep.subr.mxu0 0.0
        %523 = vmatpush2.msra.mxu0 0.0
        %524 = vmatprep.subr.mxu0 0.0
        %525 = vmatpush2.msra.mxu0 0.0
        %526 = vmatprep.mubr.f32.mxu0 0.0
        %527 = vmatmul.mubr.f32.gmra.mxu0 %v241
        %v528 = vpop.f32.mrf.mxu0
        %v529 = vadd.f32 %v237, %v528
        %v530 = vpop.f32.mrf.mxu0
        %531 = vdwg.mxu0
        %v532 = vmul.f32 %v310, %v310
        %vm533 = vcmask 1043456
        %v534 = vsel %vm533, %v532, 0.0
        %v535 = vrot.slane %v534, 4
        %v536 = vadd.f32 %v534, %v535
        %v537 = vrot.slane %v536, 2
        %v538 = vadd.f32 %v536, %v537
        %v539 = vrot.slane %v538, 1
        %v540 = vadd.f32 %v538, %v539
        %v541 = vmul.f32 %v383, %v383
        %v542 = vsel %vm533, %v541, 0.0
        %v543 = vrot.slane %v542, 4
        %v544 = vadd.f32 %v542, %v543
        %v545 = vrot.slane %v544, 2
        %v546 = vadd.f32 %v544, %v545
        %v547 = vrot.slane %v546, 1
        %v548 = vadd.f32 %v546, %v547
        %v549 = vadd.f32 %v540, %v548
        %v550 = vmul.f32 %v456, %v456
        %v551 = vsel %vm533, %v550, 0.0
        %v552 = vrot.slane %v551, 4
        %v553 = vadd.f32 %v551, %v552
        %v554 = vrot.slane %v553, 2
        %v555 = vadd.f32 %v553, %v554
        %v556 = vrot.slane %v555, 1
        %v557 = vadd.f32 %v555, %v556
        %v558 = vadd.f32 %v549, %v557
        %v559 = vmul.f32 %v529, %v529
        %v560 = vsel %vm533, %v559, 0.0
        %v561 = vrot.slane %v560, 4
        %v562 = vadd.f32 %v560, %v561
        %v563 = vrot.slane %v562, 2
        %v564 = vadd.f32 %v562, %v563
        %v565 = vrot.slane %v564, 1
        %v566 = vadd.f32 %v564, %v565
        %v567 = vadd.f32 %v558, %v566
        %v568 = vlaneseq
        %v569 = vand.u32 %v568, 127
        %v570 = vlaneseq
        %v571 = vshrl.u32 %v570, 7
        %v572 = vmul.u32 %v571, 64
        %vm573 = vcmp.ge.s32.totalorder %v569, %v572
        %v574 = vadd.s32 %v572, 64
        %vm575 = vcmp.lt.s32.totalorder %v569, %v574
        %vm576 = vmand %vm573, %vm575
        %v577 = vsel %vm576, 1, 0
        %v578 = vcvt.s32.f32 %v577
        %579 = vmatprep.subr.mxu0 0.0
        %580 = vmatpush1.xpose.msra.mxu0 0.0
        %581 = vmatprep.subr.mxu0 0.0
        %582 = vmatpush1.xpose.msra.mxu0 0.0
        %583 = vmatprep.subr.mxu0 0.0
        %584 = vmatpush1.xpose.msra.mxu0 0.0
        %585 = vmatprep.subr.mxu0 0.0
        %586 = vmatpush1.xpose.msra.mxu0 0.0
        %587 = vmatprep.subr.mxu0 0.0
        %588 = vmatpush1.xpose.msra.mxu0 0.0
        %589 = vmatprep.subr.mxu0 0.0
        %590 = vmatpush1.xpose.msra.mxu0 0.0
        %591 = vmatprep.subr.mxu0 0.0
        %592 = vmatpush1.xpose.msra.mxu0 0.0
        %593 = vmatprep.subr.mxu0 0.0
        %594 = vmatpush1.xpose.msra.mxu0 0.0
        %595 = vmatprep.subr.mxu0 0.0
        %596 = vmatpush1.xpose.msra.mxu0 0.0
        %597 = vmatprep.subr.mxu0 0.0
        %598 = vmatpush1.xpose.msra.mxu0 0.0
        %599 = vmatprep.subr.mxu0 0.0
        %600 = vmatpush1.xpose.msra.mxu0 0.0
        %601 = vmatprep.subr.mxu0 0.0
        %602 = vmatpush1.xpose.msra.mxu0 0.0
        %603 = vmatprep.subr.mxu0 0.0
        %604 = vmatpush1.xpose.msra.mxu0 0.0
        %605 = vmatprep.subr.mxu0 0.0
        %606 = vmatpush1.xpose.msra.mxu0 0.0
        %607 = vmatprep.subr.mxu0 0.0
        %608 = vmatpush1.xpose.msra.mxu0 0.0
        %609 = vmatprep.subr.mxu0 0.0
        %610 = vmatpush1.xpose.msra.mxu0 %v578
        %611 = vmatprep.subr.mxu0 0.0
        %612 = vmatpush2.xpose.msra.mxu0 0.0
        %613 = vmatprep.subr.mxu0 0.0
        %614 = vmatpush2.xpose.msra.mxu0 0.0
        %615 = vmatprep.subr.mxu0 0.0
        %616 = vmatpush2.xpose.msra.mxu0 0.0
        %617 = vmatprep.subr.mxu0 0.0
        %618 = vmatpush2.xpose.msra.mxu0 0.0
        %619 = vmatprep.subr.mxu0 0.0
        %620 = vmatpush2.xpose.msra.mxu0 0.0
        %621 = vmatprep.subr.mxu0 0.0
        %622 = vmatpush2.xpose.msra.mxu0 0.0
        %623 = vmatprep.subr.mxu0 0.0
        %624 = vmatpush2.xpose.msra.mxu0 0.0
        %625 = vmatprep.subr.mxu0 0.0
        %626 = vmatpush2.xpose.msra.mxu0 0.0
        %627 = vmatprep.subr.mxu0 0.0
        %628 = vmatpush2.xpose.msra.mxu0 0.0
        %629 = vmatprep.subr.mxu0 0.0
        %630 = vmatpush2.xpose.msra.mxu0 0.0
        %631 = vmatprep.subr.mxu0 0.0
        %632 = vmatpush2.xpose.msra.mxu0 0.0
        %633 = vmatprep.subr.mxu0 0.0
        %634 = vmatpush2.xpose.msra.mxu0 0.0
        %635 = vmatprep.subr.mxu0 0.0
        %636 = vmatpush2.xpose.msra.mxu0 0.0
        %637 = vmatprep.subr.mxu0 0.0
        %638 = vmatpush2.xpose.msra.mxu0 0.0
        %639 = vmatprep.subr.mxu0 0.0
        %640 = vmatpush2.xpose.msra.mxu0 0.0
        %641 = vmatprep.subr.mxu0 0.0
        %642 = vmatpush2.xpose.msra.mxu0 0.0
        %643 = vmatprep.mubr.f32.mxu0 0.0
        %644 = vmatmul.mubr.f32.gmra.mxu0 %v567
        %v645 = vpop.f32.mrf.mxu0
        %v646 = vadd.f32 0.0, %v645
        %v647 = vpop.f32.mrf.mxu0
        %648 = vdwg.mxu0
        %v649 = vmul.f32 %v646, 0.0009765625
        %v650 = vadd.f32 %v649, 1.1920929e-07
        %v651 = vrsqrt.pop %v650
        %vm652 = vcmask 15360
        %v654 = vsel %vm652, %v651, 0
        %vm656 = vcmask 1041408
        %v658 = vsel %vm656, %v578, 0
        %660 = vmatprep.subr.mxu0 0.0
        %661 = vmatpush1.msra.mxu0 0.0
        %662 = vmatprep.subr.mxu0 0.0
        %663 = vmatpush1.msra.mxu0 0.0
        %664 = vmatprep.subr.mxu0 0.0
        %665 = vmatpush1.msra.mxu0 0.0
        %666 = vmatprep.subr.mxu0 0.0
        %667 = vmatpush1.msra.mxu0 0.0
        %668 = vmatprep.subr.mxu0 0.0
        %669 = vmatpush1.msra.mxu0 0.0
        %670 = vmatprep.subr.mxu0 0.0
        %671 = vmatpush1.msra.mxu0 0.0
        %672 = vmatprep.subr.mxu0 0.0
        %673 = vmatpush1.msra.mxu0 0.0
        %674 = vmatprep.subr.mxu0 0.0
        %675 = vmatpush1.msra.mxu0 0.0
        %676 = vmatprep.subr.mxu0 0.0
        %677 = vmatpush1.msra.mxu0 0.0
        %678 = vmatprep.subr.mxu0 0.0
        %679 = vmatpush1.msra.mxu0 0.0
        %680 = vmatprep.subr.mxu0 0.0
        %681 = vmatpush1.msra.mxu0 0.0
        %682 = vmatprep.subr.mxu0 0.0
        %683 = vmatpush1.msra.mxu0 0.0
        %684 = vmatprep.subr.mxu0 0.0
        %685 = vmatpush1.msra.mxu0 0.0
        %686 = vmatprep.subr.mxu0 0.0
        %687 = vmatpush1.msra.mxu0 0.0
        %688 = vmatprep.subr.mxu0 0.0
        %689 = vmatpush1.msra.mxu0 0.0
        %690 = vmatprep.subr.mxu0 0.0
        %691 = vmatpush1.msra.mxu0 %v658
        %692 = vmatprep.subr.mxu0 0.0
        %693 = vmatpush2.msra.mxu0 0.0
        %694 = vmatprep.subr.mxu0 0.0
        %695 = vmatpush2.msra.mxu0 0.0
        %696 = vmatprep.subr.mxu0 0.0
        %697 = vmatpush2.msra.mxu0 0.0
        %698 = vmatprep.subr.mxu0 0.0
        %699 = vmatpush2.msra.mxu0 0.0
        %700 = vmatprep.subr.mxu0 0.0
        %701 = vmatpush2.msra.mxu0 0.0
        %702 = vmatprep.subr.mxu0 0.0
        %703 = vmatpush2.msra.mxu0 0.0
        %704 = vmatprep.subr.mxu0 0.0
        %705 = vmatpush2.msra.mxu0 0.0
        %706 = vmatprep.subr.mxu0 0.0
        %707 = vmatpush2.msra.mxu0 0.0
        %708 = vmatprep.subr.mxu0 0.0
        %709 = vmatpush2.msra.mxu0 0.0
        %710 = vmatprep.subr.mxu0 0.0
        %711 = vmatpush2.msra.mxu0 0.0
        %712 = vmatprep.subr.mxu0 0.0
        %713 = vmatpush2.msra.mxu0 0.0
        %714 = vmatprep.subr.mxu0 0.0
        %715 = vmatpush2.msra.mxu0 0.0
        %716 = vmatprep.subr.mxu0 0.0
        %717 = vmatpush2.msra.mxu0 0.0
        %718 = vmatprep.subr.mxu0 0.0
        %719 = vmatpush2.msra.mxu0 0.0
        %720 = vmatprep.subr.mxu0 0.0
        %721 = vmatpush2.msra.mxu0 0.0
        %722 = vmatprep.subr.mxu0 0.0
        %723 = vmatpush2.msra.mxu0 0.0
        %724 = vmatprep.mubr.f32.mxu0 0.0
        %725 = vmatmul.mubr.f32.gmra.mxu0 %v654
        %v726 = vpop.f32.mrf.mxu0
        %v727 = vadd.f32 0.0, %v726
        %v728 = vpop.f32.mrf.mxu0
        %729 = vdwg.mxu0
        %v730 = vlaneseq
        %v731 = vshrl.u32 %v730, 7
        %v732 = vsub.s32 0, %v731
        %v733 = vrot.slane %v727, %v732
        %v734 = vmul.f32 %v310, %v733
        %v735 = vld [vmem:[#allocation5] sm:$0xf]
        %v736 = vmul.f32 %v734, %v735
        %v737 = vmul.f32 %v383, %v733
        %s738 = scalar_lea.vmem [#allocation5], 4
        %v739 = vld [vmem:[%s738] sm:$0xf]
        %v740 = vmul.f32 %v737, %v739
        %v741 = vmul.f32 %v456, %v733
        %s742 = scalar_lea.vmem [#allocation5], 8
        %v743 = vld [vmem:[%s742] sm:$0xf]
        %v744 = vmul.f32 %v741, %v743
        %v745 = vmul.f32 %v529, %v733
        %s746 = scalar_lea.vmem [#allocation5], 12
        %v747 = vld [vmem:[%s746] sm:$0xf]
        %v748 = vmul.f32 %v745, %v747
        %v749 = vadd.f32 %v736, %v740
        %v750 = vsub.f32 %v736, %v740
        %v751 = vadd.f32 %v744, %v748
        %v752 = vsub.f32 %v744, %v748
        %v753 = vadd.f32 %v749, %v751
        %754 = vst [vmem:[%s229] sm:$0xf] %v753
        %v755 = vadd.f32 %v750, %v752
        %s756 = scalar_lea.vmem %s229, 4 [#allocation7]
        %757 = vst [vmem:[%s756] sm:$0xf] %v755
        %v758 = vsub.f32 %v749, %v751
        %s759 = scalar_lea.vmem %s229, 8 [#allocation7]
        %760 = vst [vmem:[%s759] sm:$0xf] %v758
        %v761 = vsub.f32 %v750, %v752
        %s762 = scalar_lea.vmem %s229, 12 [#allocation7]
        %763 = vst [vmem:[%s762] sm:$0xf] %v761
        %s764 = sand.u32 %s119, 1
        %s765 = scalar_lea.sflag [#allocation4], %s764
        %s766 = sand.u32 %s119, 1
        %s767 = smul.addr %s766, 16
        %s768 = scalar_lea.vmem [#allocation7], %s767
        // Predicated region
        $region45: #{tpu_custom_call.1} parent=35 // pred_check
          %p769 = pneg %p129
        $region46: #{tpu_custom_call.1} parent=35 // pred_check_branch
          %771 = sbr.rel (%p769) target = $region48
        $region47: #{tpu_custom_call.1} parent=35 // pred_region
          %s773 = ssub.s32 256, 256
          %774 = vsyncadd %s765, %s773
          %s775 = smul.addr %s22, 64
          %s776 = scalar_lea.hbm %s4, %s775
          %s777 = sshll.u32 %s768, 4
          %s778 = int_to_ptr.vmem [resolvable:$true] %s777
          %783 = dma.vmem_to_hbm [thread:$0]  %s778, 256, %s776, %s765, 64, 128, 4
        $region48: #{tpu_custom_call.1} parent=35 // pred_fallthru
          _
      $region36: #{tpu_custom_call.1} parent=5 // pred_fallthru
        _
      %p784 = scmp.le.s32.totalorder 2, %s17
      // Predicated region
      $region49: #{tpu_custom_call.1} parent=5 // pred_check
        %p785 = pneg %p784
      $region50: #{tpu_custom_call.1} parent=5 // pred_check_branch
        %787 = sbr.rel (%p785) target = $region52
      $region51: #{tpu_custom_call.1} parent=5 // pred_region
        %s788 = ssub.s32 %s17, 2
        // Predicated region
        $region53: #{tpu_custom_call.1} parent=51 // pred_check
          %p789 = pneg %p135
        $region54: #{tpu_custom_call.1} parent=51 // pred_check_branch
          %791 = sbr.rel (%p789) target = $region56
        $region55: #{tpu_custom_call.1} parent=51 // pred_region
          %s792 = sand.u32 %s120, 1
          %s793 = scalar_lea.sflag [#allocation4], %s792
          %s794 = sand.u32 %s120, 1
          %s795 = smul.addr %s794, 16
          %s796 = scalar_lea.vmem [#allocation7], %s795
          %797 = dma.done %s793, 256
        $region56: #{tpu_custom_call.1} parent=51 // pred_fallthru
          _
      $region52: #{tpu_custom_call.1} parent=5 // pred_fallthru
        _
    $region6: #{tpu_custom_call.1} parent=1 // loop_footer
      %s21 = sadd.s32 1, %s17
    $region7: #{tpu_custom_call.1} parent=1 // loop_footer_branch
      %16 = sbr.rel target = $region3
    $region8: #{tpu_custom_call.1} parent=1 // loop_exit
      _
    %798 = vsyncpa [#allocation3], 1
    %s799 = scalar_lea.sflag [#allocation3], 1
    %800 = vsyncpa %s799, 1
    %801 = vsyncpa [#allocation6], 1
    %802 = vsyncpa [#allocation4], 1
    %s803 = scalar_lea.sflag [#allocation4], 1
    %804 = vsyncpa %s803, 1

</llo_original>
